<compile_context>
chip_gen: v7x
topology: tpu7x:2x2x1
jax: 0.10.0
libtpu: 0.0.40
codegen_flags: <defaults>
</compile_context>

<pallas_src>
import jax
import jax.numpy as jnp
from jax.experimental import pallas as pl
from jax.experimental.pallas import tpu as pltpu

# ----------------------------------------------------------------------------
# Model hyperparameters (mirrors GCN.__init__ arguments)
# ----------------------------------------------------------------------------
NUM_NODES = 16
INPUT_DIM = 32
HIDDEN_DIM = 32
OUTPUT_DIM = 8
CODEBOOK_SIZE = 16
LAMB_EDGE = 0.3
LAMB_NODE = 0.7
COMMIT_WEIGHT = 0.25   # VectorQuantize(commitment_weight=0.25)
# dropout_ratio / norm_type='none' -> identity at inference
# activation -> ReLU (DGL GraphConv activation)

_VMEM = pl.BlockSpec(memory_space=pltpu.MemorySpace.VMEM)


# ----------------------------------------------------------------------------
# Fused forward kernel
# ----------------------------------------------------------------------------
def _gcn_fused_kernel(
    adj_ref, x_ref,
    gc1_w_ref, gc1_b_ref,
    cb_ref,
    dec_wt_ref, dec_b_ref,          # packed decoder_1 | decoder_2  -> [D, 2D], [1, 2D]
    gc2_w_ref, gc2_b_ref,
    lin_wt_ref, lin_b_ref,
    h1_ref, q_ref, h2_ref, out_ref, dist_ref, cbn_ref, loss_ref,
):
    adj = adj_ref[...]                                        # [N, N]

    # --- normalized adjacency, computed once, reused by both GraphConv layers.
    # adj is symmetric, so row/col degrees are equal; use an axis-0 reduction
    # for the lane-direction factor instead of transposing the [N,1] column.
    deg_row = jnp.sum(adj, axis=1, keepdims=True)             # [N, 1]
    deg_col = jnp.sum(adj, axis=0, keepdims=True)             # [1, N]
    dinv_r = jax.lax.rsqrt(jnp.maximum(deg_row, 1.0))         # clamp(min=1) ** -0.5
    dinv_c = jax.lax.rsqrt(jnp.maximum(deg_col, 1.0))
    adjn = dinv_r * adj * dinv_c                              # D^-1/2 A D^-1/2

    # --- graph_layer_1: relu(adjn @ (X W1) + b1)   (norm='none', dropout=id)
    xw = jnp.dot(x_ref[...], gc1_w_ref[...], preferred_element_type=jnp.float32)
    h1 = jnp.maximum(
        jnp.dot(adjn, xw, preferred_element_type=jnp.float32) + gc1_b_ref[...], 0.0
    )
    h1_ref[...] = h1

    # --- cosine-sim vector quantization (inference path of VectorQuantize)
    eps = 1e-12
    xn = h1 * jax.lax.rsqrt(jnp.sum(h1 * h1, axis=-1, keepdims=True) + eps)
    cb = cb_ref[...]
    cbn = cb * jax.lax.rsqrt(jnp.sum(cb * cb, axis=-1, keepdims=True) + eps)
    dist = jnp.dot(xn, cbn.T, preferred_element_type=jnp.float32)      # [N, K]
    k = dist.shape[-1]
    maxd = jnp.max(dist, axis=-1, keepdims=True)
    k_iota = jax.lax.broadcasted_iota(jnp.int32, dist.shape, 1)
    # first-true tie-break == torch argmax semantics
    first_idx = jnp.min(jnp.where(dist >= maxd, k_iota, k), axis=-1, keepdims=True)
    onehot = (k_iota == first_idx).astype(jnp.float32)
    q = jnp.dot(onehot, cbn, preferred_element_type=jnp.float32)       # [N, D]
    q_ref[...] = q
    dist_ref[...] = dist
    cbn_ref[...] = cbn
    # commit_loss = commitment_weight * mse(quantized.detach(), x)
    commit_loss = COMMIT_WEIGHT * jnp.mean((q - h1) ** 2, keepdims=True)   # (1,1)

    # --- packed decoders: one [N, D] x [D, 2D] GEMM, slice edge/node halves
    dec = (
        jnp.dot(q, dec_wt_ref[...], preferred_element_type=jnp.float32)
        + dec_b_ref[...]
    )                                                                   # [N, 2D]
    d = h1.shape[-1]
    q_edge = dec[:, :d]                                                 # decoder_1
    q_node = dec[:, d:]                                                 # decoder_2

    # --- feature reconstruction loss: lamb_node * mse(h1, quantized_node)
    node_loss = LAMB_NODE * jnp.mean((h1 - q_node) ** 2, keepdims=True)

    # --- edge reconstruction loss: lamb_edge * sqrt(mse(adj, minmax(qe qe^T)))
    aq = jnp.dot(q_edge, q_edge.T, preferred_element_type=jnp.float32)  # [N, N]
    mn = jnp.min(aq, keepdims=True)
    mx = jnp.max(aq, keepdims=True)
    aqn = (aq - mn) / jnp.maximum(mx - mn, 1e-12)                       # eps guard
    de = adj - aqn
    edge_loss = LAMB_EDGE * jnp.sqrt(jnp.mean(de * de, keepdims=True))

    # --- graph_layer_2: relu(adjn @ (quantized_edge W2) + b2)
    qw = jnp.dot(q_edge, gc2_w_ref[...], preferred_element_type=jnp.float32)
    h2 = jnp.maximum(
        jnp.dot(adjn, qw, preferred_element_type=jnp.float32) + gc2_b_ref[...], 0.0
    )
    h2_ref[...] = h2

    # --- output projection
    out_ref[...] = (
        jnp.dot(h2, lin_wt_ref[...], preferred_element_type=jnp.float32)
        + lin_b_ref[...]
    )

    # --- total loss (single packed scalar output)
    loss_ref[...] = node_loss + edge_loss + commit_loss


# ----------------------------------------------------------------------------
# Pallas wrapper: one pallas_call for the whole forward pass
# ----------------------------------------------------------------------------
def gcn_forward(adj, feats, params):
    n, d_in = feats.shape
    k = params["codebook"].shape[0]
    h_dim = params["gc2_w"].shape[1]
    o_dim = params["lin_wt"].shape[1]

    h1, quantized, h2, out, dist, codebook, loss = pl.pallas_call(
        _gcn_fused_kernel,
        out_shape=(
            jax.ShapeDtypeStruct((n, d_in), jnp.float32),    # h1
            jax.ShapeDtypeStruct((n, d_in), jnp.float32),    # quantized
            jax.ShapeDtypeStruct((n, h_dim), jnp.float32),   # h2
            jax.ShapeDtypeStruct((n, o_dim), jnp.float32),   # output
            jax.ShapeDtypeStruct((n, k), jnp.float32),       # dist (cosine sims)
            jax.ShapeDtypeStruct((k, d_in), jnp.float32),    # normalized codebook
            jax.ShapeDtypeStruct((1, 1), jnp.float32),       # total loss
        ),
        in_specs=[_VMEM] * 11,
        out_specs=(_VMEM,) * 7,
    )(
        adj, feats,
        params["gc1_w"], params["gc1_b"],
        params["codebook"],
        params["dec_wt"], params["dec_b"],
        params["gc2_w"], params["gc2_b"],
        params["lin_wt"], params["lin_b"],
    )

    h_list = [h1, quantized, h2]
    return h_list, out, loss[0, 0], jnp.squeeze(dist), codebook


# ----------------------------------------------------------------------------
# Deterministic parameter construction
# ----------------------------------------------------------------------------
def make_params(key):
    keys = jax.random.split(key, 10)

    def w(kk, shape, scale=0.1):
        return (scale * jax.random.normal(kk, shape)).astype(jnp.float32)

    dec1_wt = w(keys[2], (INPUT_DIM, INPUT_DIM))   # decoder_1 (pre-transposed [in,out])
    dec1_b = w(keys[3], (1, INPUT_DIM))
    dec2_wt = w(keys[4], (INPUT_DIM, INPUT_DIM))   # decoder_2
    dec2_b = w(keys[5], (1, INPUT_DIM))

    return {
        # GraphConv weights stored [in, out] (DGL convention)
        "gc1_w": w(keys[0], (INPUT_DIM, INPUT_DIM)),
        "gc1_b": jnp.zeros((1, INPUT_DIM), jnp.float32),
        "gc2_w": w(keys[1], (INPUT_DIM, HIDDEN_DIM)),
        "gc2_b": jnp.zeros((1, HIDDEN_DIM), jnp.float32),
        # decoders packed into one GEMM: [D, 2D] / [1, 2D]  (edge half | node half)
        "dec_wt": jnp.concatenate([dec1_wt, dec2_wt], axis=1),
        "dec_b": jnp.concatenate([dec1_b, dec2_b], axis=1),
        # output projection, pre-transposed [in, out]
        "lin_wt": w(keys[6], (HIDDEN_DIM, OUTPUT_DIM)),
        "lin_b": w(keys[7], (1, OUTPUT_DIM)),
        # VQ codebook [codebook_size, dim]
        "codebook": w(keys[8], (CODEBOOK_SIZE, INPUT_DIM), scale=1.0),
    }


# TODO(synk): EMA codebook update (decay=0.8) and dropout are training-only and
# are not part of the inference forward implemented here.

if __name__ == "__main__":
    key = jax.random.PRNGKey(0)
    k_feat, k_adj, k_par = jax.random.split(key, 3)

    feats = jax.random.normal(k_feat, (NUM_NODES, INPUT_DIM), jnp.float32)
    a = jax.random.bernoulli(k_adj, 0.3, (NUM_NODES, NUM_NODES)).astype(jnp.float32)
    adj = jnp.maximum(a, a.T) * (1.0 - jnp.eye(NUM_NODES, dtype=jnp.float32))

    params = make_params(k_par)

    fwd = jax.jit(gcn_forward)
    h_list, h_out, loss, dist, codebook = fwd(adj, feats, params)
    jax.block_until_ready((h_list, h_out, loss, dist, codebook))

    assert h_out.shape == (NUM_NODES, OUTPUT_DIM)
    assert h_list[0].shape == (NUM_NODES, INPUT_DIM)
    assert h_list[1].shape == (NUM_NODES, INPUT_DIM)
    assert h_list[2].shape == (NUM_NODES, HIDDEN_DIM)
    assert dist.shape == (NUM_NODES, CODEBOOK_SIZE)
    assert codebook.shape == (CODEBOOK_SIZE, INPUT_DIM)
    assert jnp.isfinite(loss)
    print("KERNEL_OK")
</pallas_src>

<mosaic_0001>
module attributes {stable_mosaic.version = 11 : i64} {
  func.func @_gcn_fused_kernel(%arg0: memref<16x16xf32, #tpu.memory_space<vmem>>, %arg1: memref<16x32xf32, #tpu.memory_space<vmem>>, %arg2: memref<32x32xf32, #tpu.memory_space<vmem>>, %arg3: memref<1x32xf32, #tpu.memory_space<vmem>>, %arg4: memref<16x32xf32, #tpu.memory_space<vmem>>, %arg5: memref<32x64xf32, #tpu.memory_space<vmem>>, %arg6: memref<1x64xf32, #tpu.memory_space<vmem>>, %arg7: memref<32x32xf32, #tpu.memory_space<vmem>>, %arg8: memref<1x32xf32, #tpu.memory_space<vmem>>, %arg9: memref<32x8xf32, #tpu.memory_space<vmem>>, %arg10: memref<1x8xf32, #tpu.memory_space<vmem>>, %arg11: memref<16x32xf32, #tpu.memory_space<vmem>>, %arg12: memref<16x32xf32, #tpu.memory_space<vmem>>, %arg13: memref<16x32xf32, #tpu.memory_space<vmem>>, %arg14: memref<16x8xf32, #tpu.memory_space<vmem>>, %arg15: memref<16x16xf32, #tpu.memory_space<vmem>>, %arg16: memref<16x32xf32, #tpu.memory_space<vmem>>, %arg17: memref<1x1xf32, #tpu.memory_space<vmem>>) attributes {dimension_semantics = [], scalar_prefetch = 0 : i64, scratch_operands = 0 : i64, tpu.core_type = #tpu.core_type<tc>} {
    %c0 = arith.constant 0 : index
    %c0_0 = arith.constant 0 : index
    %0 = vector.load %arg0[%c0, %c0_0] : memref<16x16xf32, #tpu.memory_space<vmem>>, vector<16x16xf32>
    %cst = arith.constant dense<0.000000e+00> : vector<16xf32>
    %1 = vector.multi_reduction <add>, %0, %cst [1] : vector<16x16xf32> to vector<16xf32>
    %2 = vector.shape_cast %1 : vector<16xf32> to vector<16x1xf32>
    %cst_1 = arith.constant dense<0.000000e+00> : vector<16xf32>
    %3 = vector.multi_reduction <add>, %0, %cst_1 [0] : vector<16x16xf32> to vector<16xf32>
    %4 = vector.shape_cast %3 : vector<16xf32> to vector<1x16xf32>
    %cst_2 = arith.constant 1.000000e+00 : f32
    %5 = vector.broadcast %cst_2 : f32 to vector<16x1xf32>
    %6 = arith.maximumf %2, %5 : vector<16x1xf32>
    %7 = math.rsqrt %6 : vector<16x1xf32>
    %cst_3 = arith.constant 1.000000e+00 : f32
    %8 = vector.broadcast %cst_3 : f32 to vector<1x16xf32>
    %9 = arith.maximumf %4, %8 : vector<1x16xf32>
    %10 = math.rsqrt %9 : vector<1x16xf32>
    %11 = vector.broadcast %7 : vector<16x1xf32> to vector<16x16xf32>
    %12 = arith.mulf %11, %0 : vector<16x16xf32>
    %13 = vector.broadcast %10 : vector<1x16xf32> to vector<16x16xf32>
    %14 = arith.mulf %12, %13 : vector<16x16xf32>
    %c0_4 = arith.constant 0 : index
    %c0_5 = arith.constant 0 : index
    %15 = vector.load %arg1[%c0_4, %c0_5] : memref<16x32xf32, #tpu.memory_space<vmem>>, vector<16x32xf32>
    %c0_6 = arith.constant 0 : index
    %c0_7 = arith.constant 0 : index
    %16 = vector.load %arg2[%c0_6, %c0_7] : memref<32x32xf32, #tpu.memory_space<vmem>>, vector<32x32xf32>
    %cst_8 = arith.constant dense<0.000000e+00> : vector<16x32xf32>
    %17 = tpu.matmul %15, %16, %cst_8 {dimension_numbers = #tpu.dot_dimension_numbers<[1], [0], [0], [1], [0, 0, 1, 1], [], []>} : vector<16x32xf32>, vector<32x32xf32>, vector<16x32xf32> -> vector<16x32xf32>
    %cst_9 = arith.constant dense<0.000000e+00> : vector<16x32xf32>
    %18 = tpu.matmul %14, %17, %cst_9 {dimension_numbers = #tpu.dot_dimension_numbers<[1], [0], [0], [1], [0, 0, 1, 1], [], []>} : vector<16x16xf32>, vector<16x32xf32>, vector<16x32xf32> -> vector<16x32xf32>
    %c0_10 = arith.constant 0 : index
    %c0_11 = arith.constant 0 : index
    %19 = vector.load %arg3[%c0_10, %c0_11] : memref<1x32xf32, #tpu.memory_space<vmem>>, vector<1x32xf32>
    %20 = vector.broadcast %19 : vector<1x32xf32> to vector<16x32xf32>
    %21 = arith.addf %18, %20 : vector<16x32xf32>
    %cst_12 = arith.constant 0.000000e+00 : f32
    %22 = vector.broadcast %cst_12 : f32 to vector<16x32xf32>
    %23 = arith.maximumf %21, %22 : vector<16x32xf32>
    %c0_13 = arith.constant 0 : index
    %c0_14 = arith.constant 0 : index
    %24 = vector.load %arg11[%c0_13, %c0_14] : memref<16x32xf32, #tpu.memory_space<vmem>>, vector<16x32xf32>
    tpu.vector_store %arg11[%c0_13, %c0_14], %23 {strides = array<i32>} : memref<16x32xf32, #tpu.memory_space<vmem>>, vector<16x32xf32>,
    %25 = arith.mulf %23, %23 : vector<16x32xf32>
    %cst_15 = arith.constant dense<0.000000e+00> : vector<16xf32>
    %26 = vector.multi_reduction <add>, %25, %cst_15 [1] : vector<16x32xf32> to vector<16xf32>
    %27 = vector.shape_cast %26 : vector<16xf32> to vector<16x1xf32>
    %cst_16 = arith.constant 9.99999996E-13 : f32
    %28 = vector.broadcast %cst_16 : f32 to vector<16x1xf32>
    %29 = arith.addf %27, %28 : vector<16x1xf32>
    %30 = math.rsqrt %29 : vector<16x1xf32>
    %31 = vector.broadcast %30 : vector<16x1xf32> to vector<16x32xf32>
    %32 = arith.mulf %23, %31 : vector<16x32xf32>
    %c0_17 = arith.constant 0 : index
    %c0_18 = arith.constant 0 : index
    %33 = vector.load %arg4[%c0_17, %c0_18] : memref<16x32xf32, #tpu.memory_space<vmem>>, vector<16x32xf32>
    %34 = arith.mulf %33, %33 : vector<16x32xf32>
    %cst_19 = arith.constant dense<0.000000e+00> : vector<16xf32>
    %35 = vector.multi_reduction <add>, %34, %cst_19 [1] : vector<16x32xf32> to vector<16xf32>
    %36 = vector.shape_cast %35 : vector<16xf32> to vector<16x1xf32>
    %cst_20 = arith.constant 9.99999996E-13 : f32
    %37 = vector.broadcast %cst_20 : f32 to vector<16x1xf32>
    %38 = arith.addf %36, %37 : vector<16x1xf32>
    %39 = math.rsqrt %38 : vector<16x1xf32>
    %40 = vector.broadcast %39 : vector<16x1xf32> to vector<16x32xf32>
    %41 = arith.mulf %33, %40 : vector<16x32xf32>
    %42 = tpu.transpose %41, [1, 0] : vector<16x32xf32> -> vector<32x16xf32>
    %cst_21 = arith.constant dense<0.000000e+00> : vector<16x16xf32>
    %43 = tpu.matmul %32, %42, %cst_21 {dimension_numbers = #tpu.dot_dimension_numbers<[1], [0], [0], [1], [0, 0, 1, 1], [], []>} : vector<16x32xf32>, vector<32x16xf32>, vector<16x16xf32> -> vector<16x16xf32>
    %cst_22 = arith.constant dense<0xFF800000> : vector<16xf32>
    %44 = vector.multi_reduction <maximumf>, %43, %cst_22 [1] : vector<16x16xf32> to vector<16xf32>
    %45 = vector.shape_cast %44 : vector<16xf32> to vector<16x1xf32>
    %46 = tpu.iota {dimensions = array<i32: 1>} : vector<16x16xi32>
    %47 = vector.broadcast %45 : vector<16x1xf32> to vector<16x16xf32>
    %48 = arith.cmpf oge, %43, %47 : vector<16x16xf32>
    %c16_i32 = arith.constant 16 : i32
    %49 = vector.broadcast %c16_i32 : i32 to vector<16x16xi32>
    %50 = arith.select %48, %46, %49 : vector<16x16xi1>, vector<16x16xi32>
    %cst_23 = arith.constant dense<2147483647> : vector<16xi32>
    %51 = vector.multi_reduction <minsi>, %50, %cst_23 [1] : vector<16x16xi32> to vector<16xi32>
    %52 = vector.shape_cast %51 : vector<16xi32> to vector<16x1xi32>
    %53 = vector.broadcast %52 : vector<16x1xi32> to vector<16x16xi32>
    %54 = arith.cmpi eq, %46, %53 : vector<16x16xi32>
    %55 = arith.extui %54 : vector<16x16xi1> to vector<16x16xi32>
    %56 = arith.sitofp %55 : vector<16x16xi32> to vector<16x16xf32>
    %cst_24 = arith.constant dense<0.000000e+00> : vector<16x32xf32>
    %57 = tpu.matmul %56, %41, %cst_24 {dimension_numbers = #tpu.dot_dimension_numbers<[1], [0], [0], [1], [0, 0, 1, 1], [], []>} : vector<16x16xf32>, vector<16x32xf32>, vector<16x32xf32> -> vector<16x32xf32>
    %c0_25 = arith.constant 0 : index
    %c0_26 = arith.constant 0 : index
    %58 = vector.load %arg12[%c0_25, %c0_26] : memref<16x32xf32, #tpu.memory_space<vmem>>, vector<16x32xf32>
    tpu.vector_store %arg12[%c0_25, %c0_26], %57 {strides = array<i32>} : memref<16x32xf32, #tpu.memory_space<vmem>>, vector<16x32xf32>,
    %c0_27 = arith.constant 0 : index
    %c0_28 = arith.constant 0 : index
    %59 = vector.load %arg15[%c0_27, %c0_28] : memref<16x16xf32, #tpu.memory_space<vmem>>, vector<16x16xf32>
    tpu.vector_store %arg15[%c0_27, %c0_28], %43 {strides = array<i32>} : memref<16x16xf32, #tpu.memory_space<vmem>>, vector<16x16xf32>,
    %c0_29 = arith.constant 0 : index
    %c0_30 = arith.constant 0 : index
    %60 = vector.load %arg16[%c0_29, %c0_30] : memref<16x32xf32, #tpu.memory_space<vmem>>, vector<16x32xf32>
    tpu.vector_store %arg16[%c0_29, %c0_30], %41 {strides = array<i32>} : memref<16x32xf32, #tpu.memory_space<vmem>>, vector<16x32xf32>,
    %61 = arith.subf %57, %23 : vector<16x32xf32>
    %62 = arith.mulf %61, %61 : vector<16x32xf32>
    %63 = vector.shape_cast %62 : vector<16x32xf32> to vector<1x16x32xf32>
    %cst_31 = arith.constant dense<0.000000e+00> : vector<1xf32>
    %64 = vector.multi_reduction <add>, %63, %cst_31 [1, 2] : vector<1x16x32xf32> to vector<1xf32>
    %65 = vector.shape_cast %64 : vector<1xf32> to vector<1x1x1xf32>
    %66 = vector.extract %65[0, 0, 0] : f32 from vector<1x1x1xf32>
    %67 = vector.broadcast %66 : f32 to vector<1x1xf32>
    %cst_32 = arith.constant 5.120000e+02 : f32
    %68 = vector.broadcast %cst_32 : f32 to vector<1x1xf32>
    %69 = arith.divf %67, %68 : vector<1x1xf32>
    %cst_33 = arith.constant 2.500000e-01 : f32
    %70 = vector.broadcast %cst_33 : f32 to vector<1x1xf32>
    %71 = arith.mulf %70, %69 : vector<1x1xf32>
    %c0_34 = arith.constant 0 : index
    %c0_35 = arith.constant 0 : index
    %72 = vector.load %arg5[%c0_34, %c0_35] : memref<32x64xf32, #tpu.memory_space<vmem>>, vector<32x64xf32>
    %cst_36 = arith.constant dense<0.000000e+00> : vector<16x64xf32>
    %73 = tpu.matmul %57, %72, %cst_36 {dimension_numbers = #tpu.dot_dimension_numbers<[1], [0], [0], [1], [0, 0, 1, 1], [], []>} : vector<16x32xf32>, vector<32x64xf32>, vector<16x64xf32> -> vector<16x64xf32>
    %c0_37 = arith.constant 0 : index
    %c0_38 = arith.constant 0 : index
    %74 = vector.load %arg6[%c0_37, %c0_38] : memref<1x64xf32, #tpu.memory_space<vmem>>, vector<1x64xf32>
    %75 = vector.broadcast %74 : vector<1x64xf32> to vector<16x64xf32>
    %76 = arith.addf %73, %75 : vector<16x64xf32>
    %77 = vector.extract_strided_slice %76 {offsets = [0, 0], sizes = [16, 32], strides = [1, 1]} : vector<16x64xf32> to vector<16x32xf32>
    %78 = vector.extract_strided_slice %76 {offsets = [0, 32], sizes = [16, 32], strides = [1, 1]} : vector<16x64xf32> to vector<16x32xf32>
    %79 = arith.subf %23, %78 : vector<16x32xf32>
    %80 = arith.mulf %79, %79 : vector<16x32xf32>
    %81 = vector.shape_cast %80 : vector<16x32xf32> to vector<1x16x32xf32>
    %cst_39 = arith.constant dense<0.000000e+00> : vector<1xf32>
    %82 = vector.multi_reduction <add>, %81, %cst_39 [1, 2] : vector<1x16x32xf32> to vector<1xf32>
    %83 = vector.shape_cast %82 : vector<1xf32> to vector<1x1x1xf32>
    %84 = vector.extract %83[0, 0, 0] : f32 from vector<1x1x1xf32>
    %85 = vector.broadcast %84 : f32 to vector<1x1xf32>
    %cst_40 = arith.constant 5.120000e+02 : f32
    %86 = vector.broadcast %cst_40 : f32 to vector<1x1xf32>
    %87 = arith.divf %85, %86 : vector<1x1xf32>
    %cst_41 = arith.constant 0.699999988 : f32
    %88 = vector.broadcast %cst_41 : f32 to vector<1x1xf32>
    %89 = arith.mulf %88, %87 : vector<1x1xf32>
    %90 = tpu.transpose %77, [1, 0] : vector<16x32xf32> -> vector<32x16xf32>
    %cst_42 = arith.constant dense<0.000000e+00> : vector<16x16xf32>
    %91 = tpu.matmul %77, %90, %cst_42 {dimension_numbers = #tpu.dot_dimension_numbers<[1], [0], [0], [1], [0, 0, 1, 1], [], []>} : vector<16x32xf32>, vector<32x16xf32>, vector<16x16xf32> -> vector<16x16xf32>
    %92 = vector.shape_cast %91 : vector<16x16xf32> to vector<1x16x16xf32>
    %cst_43 = arith.constant dense<0x7F800000> : vector<1xf32>
    %93 = vector.multi_reduction <minimumf>, %92, %cst_43 [1, 2] : vector<1x16x16xf32> to vector<1xf32>
    %94 = vector.shape_cast %93 : vector<1xf32> to vector<1x1x1xf32>
    %95 = vector.extract %94[0, 0, 0] : f32 from vector<1x1x1xf32>
    %96 = vector.broadcast %95 : f32 to vector<1x1xf32>
    %97 = vector.shape_cast %91 : vector<16x16xf32> to vector<1x16x16xf32>
    %cst_44 = arith.constant dense<0xFF800000> : vector<1xf32>
    %98 = vector.multi_reduction <maximumf>, %97, %cst_44 [1, 2] : vector<1x16x16xf32> to vector<1xf32>
    %99 = vector.shape_cast %98 : vector<1xf32> to vector<1x1x1xf32>
    %100 = vector.extract %99[0, 0, 0] : f32 from vector<1x1x1xf32>
    %101 = vector.broadcast %100 : f32 to vector<1x1xf32>
    %102 = vector.broadcast %96 : vector<1x1xf32> to vector<16x16xf32>
    %103 = arith.subf %91, %102 : vector<16x16xf32>
    %104 = arith.subf %101, %96 : vector<1x1xf32>
    %cst_45 = arith.constant 9.99999996E-13 : f32
    %105 = vector.broadcast %cst_45 : f32 to vector<1x1xf32>
    %106 = arith.maximumf %104, %105 : vector<1x1xf32>
    %107 = vector.broadcast %106 : vector<1x1xf32> to vector<16x16xf32>
    %108 = arith.divf %103, %107 : vector<16x16xf32>
    %109 = arith.subf %0, %108 : vector<16x16xf32>
    %110 = arith.mulf %109, %109 : vector<16x16xf32>
    %111 = vector.shape_cast %110 : vector<16x16xf32> to vector<1x16x16xf32>
    %cst_46 = arith.constant dense<0.000000e+00> : vector<1xf32>
    %112 = vector.multi_reduction <add>, %111, %cst_46 [1, 2] : vector<1x16x16xf32> to vector<1xf32>
    %113 = vector.shape_cast %112 : vector<1xf32> to vector<1x1x1xf32>
    %114 = vector.extract %113[0, 0, 0] : f32 from vector<1x1x1xf32>
    %115 = vector.broadcast %114 : f32 to vector<1x1xf32>
    %cst_47 = arith.constant 2.560000e+02 : f32
    %116 = vector.broadcast %cst_47 : f32 to vector<1x1xf32>
    %117 = arith.divf %115, %116 : vector<1x1xf32>
    %118 = math.sqrt %117 : vector<1x1xf32>
    %cst_48 = arith.constant 3.000000e-01 : f32
    %119 = vector.broadcast %cst_48 : f32 to vector<1x1xf32>
    %120 = arith.mulf %119, %118 : vector<1x1xf32>
    %c0_49 = arith.constant 0 : index
    %c0_50 = arith.constant 0 : index
    %121 = vector.load %arg7[%c0_49, %c0_50] : memref<32x32xf32, #tpu.memory_space<vmem>>, vector<32x32xf32>
    %cst_51 = arith.constant dense<0.000000e+00> : vector<16x32xf32>
    %122 = tpu.matmul %77, %121, %cst_51 {dimension_numbers = #tpu.dot_dimension_numbers<[1], [0], [0], [1], [0, 0, 1, 1], [], []>} : vector<16x32xf32>, vector<32x32xf32>, vector<16x32xf32> -> vector<16x32xf32>
    %cst_52 = arith.constant dense<0.000000e+00> : vector<16x32xf32>
    %123 = tpu.matmul %14, %122, %cst_52 {dimension_numbers = #tpu.dot_dimension_numbers<[1], [0], [0], [1], [0, 0, 1, 1], [], []>} : vector<16x16xf32>, vector<16x32xf32>, vector<16x32xf32> -> vector<16x32xf32>
    %c0_53 = arith.constant 0 : index
    %c0_54 = arith.constant 0 : index
    %124 = vector.load %arg8[%c0_53, %c0_54] : memref<1x32xf32, #tpu.memory_space<vmem>>, vector<1x32xf32>
    %125 = vector.broadcast %124 : vector<1x32xf32> to vector<16x32xf32>
    %126 = arith.addf %123, %125 : vector<16x32xf32>
    %cst_55 = arith.constant 0.000000e+00 : f32
    %127 = vector.broadcast %cst_55 : f32 to vector<16x32xf32>
    %128 = arith.maximumf %126, %127 : vector<16x32xf32>
    %c0_56 = arith.constant 0 : index
    %c0_57 = arith.constant 0 : index
    %129 = vector.load %arg13[%c0_56, %c0_57] : memref<16x32xf32, #tpu.memory_space<vmem>>, vector<16x32xf32>
    tpu.vector_store %arg13[%c0_56, %c0_57], %128 {strides = array<i32>} : memref<16x32xf32, #tpu.memory_space<vmem>>, vector<16x32xf32>,
    %c0_58 = arith.constant 0 : index
    %c0_59 = arith.constant 0 : index
    %130 = vector.load %arg9[%c0_58, %c0_59] : memref<32x8xf32, #tpu.memory_space<vmem>>, vector<32x8xf32>
    %cst_60 = arith.constant dense<0.000000e+00> : vector<16x8xf32>
    %131 = tpu.matmul %128, %130, %cst_60 {dimension_numbers = #tpu.dot_dimension_numbers<[1], [0], [0], [1], [0, 0, 1, 1], [], []>} : vector<16x32xf32>, vector<32x8xf32>, vector<16x8xf32> -> vector<16x8xf32>
    %c0_61 = arith.constant 0 : index
    %c0_62 = arith.constant 0 : index
    %132 = vector.load %arg10[%c0_61, %c0_62] : memref<1x8xf32, #tpu.memory_space<vmem>>, vector<1x8xf32>
    %133 = vector.broadcast %132 : vector<1x8xf32> to vector<16x8xf32>
    %134 = arith.addf %131, %133 : vector<16x8xf32>
    %c0_63 = arith.constant 0 : index
    %c0_64 = arith.constant 0 : index
    %135 = vector.load %arg14[%c0_63, %c0_64] : memref<16x8xf32, #tpu.memory_space<vmem>>, vector<16x8xf32>
    tpu.vector_store %arg14[%c0_63, %c0_64], %134 {strides = array<i32>} : memref<16x8xf32, #tpu.memory_space<vmem>>, vector<16x8xf32>,
    %136 = arith.addf %89, %120 : vector<1x1xf32>
    %137 = arith.addf %136, %71 : vector<1x1xf32>
    %c0_65 = arith.constant 0 : index
    %c0_66 = arith.constant 0 : index
    %138 = vector.load %arg17[%c0_65, %c0_66] : memref<1x1xf32, #tpu.memory_space<vmem>>, vector<1x1xf32>
    tpu.vector_store %arg17[%c0_65, %c0_66], %137 {strides = array<i32>} : memref<1x1xf32, #tpu.memory_space<vmem>>, vector<1x1xf32>,
    return
  }
}

</mosaic_0001>

<llo_original>
// kernel: gcn_forward.1
$region0: #{gcn_forward.1}
  #allocation0 [shape = 'u32[]', space=smem, size = 0x4, offset = 0x4, fixed_abs, tag = 'smem constant byte address 0x4 - core index']
  #allocation1 [shape = 'u32[144,128]{1,0:T(1,128)}', space=vmem, size = 0x12000, scoped, tag = 'internal scratch']
  %s0 = inlined_call_operand.hbm [shape: f32[16,16], index: 0, kind: input, shape index: {}]
  %s1 = inlined_call_operand.hbm [shape: f32[16,32], index: 1, kind: input, shape index: {}]
  %s2 = inlined_call_operand.vmem [shape: f32[32,32], index: 2, kind: input, shape index: {}]
  %s3 = inlined_call_operand.vmem [shape: f32[1,32], index: 3, kind: input, shape index: {}]
  %s4 = inlined_call_operand.hbm [shape: f32[16,32], index: 4, kind: input, shape index: {}]
  %s5 = inlined_call_operand.hbm [shape: f32[32,64], index: 5, kind: input, shape index: {}]
  %s6 = inlined_call_operand.vmem [shape: f32[1,64], index: 6, kind: input, shape index: {}]
  %s7 = inlined_call_operand.vmem [shape: f32[32,32], index: 7, kind: input, shape index: {}]
  %s8 = inlined_call_operand.hbm [shape: f32[1,32], index: 8, kind: input, shape index: {}]
  %s9 = inlined_call_operand.vmem [shape: f32[32,8], index: 9, kind: input, shape index: {}]
  %s10 = inlined_call_operand.hbm [shape: f32[1,8], index: 10, kind: input, shape index: {}]
  %s11 = inlined_call_operand.hbm [shape: f32[16,32], index: 11, kind: output, shape index: {0}]
  %s12 = inlined_call_operand.hbm [shape: f32[16,32], index: 12, kind: output, shape index: {1}]
  %s13 = inlined_call_operand.hbm [shape: f32[16,32], index: 13, kind: output, shape index: {2}]
  %s14 = inlined_call_operand.vmem [shape: f32[16,8], index: 14, kind: output, shape index: {3}]
  %s15 = inlined_call_operand.hbm [shape: f32[16,16], index: 15, kind: output, shape index: {4}]
  %s16 = inlined_call_operand.hbm [shape: f32[16,32], index: 16, kind: output, shape index: {5}]
  %s17 = inlined_call_operand.hbm [shape: f32[1,1], index: 17, kind: output, shape index: {6}]
  %18 = xla_tuple %s11, %s12, %s13, %s14, %s15, %s16, %s17
  %s19 = sld [smem:[#allocation0]]
  $region126: #{gcn_forward.1} parent=0
    _
  %s21 = ssub.s32 1, %s19
  %s22 = scalar_select 0, %s21, %s19
  $region1: #{gcn_forward.1} parent=0
    #allocation2 [shape = 'u8[8192]{0}', space=vmem, size = 0x2000, scoped, tag = 'input window, operand 0, single buffered']
    #allocation3 [shape = 's32[1]{0}', space=sflag, size = 0x4, scoped, tag = 'scoped memory for gcn_forward.1']
    #allocation4 [shape = 's32[1]{0}', space=sflag, size = 0x4, scoped, tag = 'scoped memory for gcn_forward.1']
    #allocation5 [shape = 'u8[8192]{0}', space=vmem, size = 0x2000, scoped, tag = 'input window, operand 1, single buffered']
    #allocation6 [shape = 's32[1]{0}', space=sflag, size = 0x4, scoped, tag = 'scoped memory for gcn_forward.1']
    #allocation7 [shape = 'u8[8192]{0}', space=vmem, size = 0x2000, scoped, tag = 'input window, operand 4, single buffered']
    #allocation8 [shape = 'u8[16384]{0}', space=vmem, size = 0x4000, scoped, tag = 'input window, operand 5, single buffered']
    #allocation9 [shape = 's32[1]{0}', space=sflag, size = 0x4, scoped, tag = 'scoped memory for gcn_forward.1']
    #allocation10 [shape = 'u8[512]{0}', space=vmem, size = 0x400, scoped, tag = 'input window, operand 8, single buffered']
    #allocation11 [shape = 'u8[512]{0}', space=vmem, size = 0x400, scoped, tag = 'input window, operand 10, single buffered']
    #allocation12 [shape = 's32[1]{0}', space=sflag, size = 0x4, scoped, tag = 'scoped memory for gcn_forward.1']
    #allocation13 [shape = 'u8[8192]{0}', space=vmem, size = 0x2000, scoped, tag = 'output window, operand 0, single buffered']
    #allocation14 [shape = 'u8[8192]{0}', space=vmem, size = 0x2000, scoped, tag = 'output window, operand 1, single buffered']
    #allocation15 [shape = 's32[1]{0}', space=sflag, size = 0x4, scoped, tag = 'scoped memory for gcn_forward.1']
    #allocation16 [shape = 'u8[8192]{0}', space=vmem, size = 0x2000, scoped, tag = 'output window, operand 2, single buffered']
    #allocation17 [shape = 'u8[8192]{0}', space=vmem, size = 0x2000, scoped, tag = 'output window, operand 4, single buffered']
    #allocation18 [shape = 's32[1]{0}', space=sflag, size = 0x4, scoped, tag = 'scoped memory for gcn_forward.1']
    #allocation19 [shape = 'u8[8192]{0}', space=vmem, size = 0x2000, scoped, tag = 'output window, operand 5, single buffered']
    #allocation20 [shape = 'u8[512]{0}', space=vmem, size = 0x400, scoped, tag = 'output window, operand 6, single buffered']
    #allocation21 [shape = 's32[1]{0}', space=sflag, size = 0x4, scoped, tag = 'scoped memory for gcn_forward.1']
    %23 = vsyncpa [#allocation3], 0
    %24 = vsyncpa [#allocation6], 0
    %25 = vsyncpa [#allocation9], 0
    %26 = vsyncpa [#allocation12], 0
    %27 = vsyncpa [#allocation4], 0
    %28 = vsyncpa [#allocation15], 0
    %29 = vsyncpa [#allocation18], 0
    %30 = vsyncpa [#allocation21], 0
    // Predicated region
    $region2: #{gcn_forward.1} parent=1 // pred_check
      _
    $region3: #{gcn_forward.1} parent=1 // pred_check_branch
      %32 = sbr.rel (0) target = $region5
    $region4: #{gcn_forward.1} parent=1 // pred_region
      %s34 = ssub.s32 256, 256
      %35 = vsyncadd [#allocation3], %s34
      %s36 = sshll.u32 [#allocation2], 4
      %s37 = int_to_ptr.vmem [resolvable:$true] %s36
      %42 = dma.hbm_to_vmem [thread:$0]  %s0, 256, %s37, [#allocation3], 128, 128, 8
    $region5: #{gcn_forward.1} parent=1 // pred_fallthru
      _
    // Predicated region
    $region6: #{gcn_forward.1} parent=1 // pred_check
      _
    $region7: #{gcn_forward.1} parent=1 // pred_check_branch
      %44 = sbr.rel (0) target = $region9
    $region8: #{gcn_forward.1} parent=1 // pred_region
      %s46 = ssub.s32 256, 256
      %47 = vsyncadd [#allocation6], %s46
      %s48 = sshll.u32 [#allocation5], 4
      %s49 = int_to_ptr.vmem [resolvable:$true] %s48
      %54 = dma.hbm_to_vmem [thread:$0]  %s1, 256, %s49, [#allocation6], 128, 128, 8
    $region9: #{gcn_forward.1} parent=1 // pred_fallthru
      _
    // Predicated region
    $region10: #{gcn_forward.1} parent=1 // pred_check
      _
    $region11: #{gcn_forward.1} parent=1 // pred_check_branch
      %56 = sbr.rel (0) target = $region13
    $region12: #{gcn_forward.1} parent=1 // pred_region
      _
    $region13: #{gcn_forward.1} parent=1 // pred_fallthru
      _
    // Predicated region
    $region14: #{gcn_forward.1} parent=1 // pred_check
      _
    $region15: #{gcn_forward.1} parent=1 // pred_check_branch
      %58 = sbr.rel (0) target = $region17
    $region16: #{gcn_forward.1} parent=1 // pred_region
      _
    $region17: #{gcn_forward.1} parent=1 // pred_fallthru
      _
    // Predicated region
    $region18: #{gcn_forward.1} parent=1 // pred_check
      _
    $region19: #{gcn_forward.1} parent=1 // pred_check_branch
      %60 = sbr.rel (0) target = $region21
    $region20: #{gcn_forward.1} parent=1 // pred_region
      %s62 = ssub.s32 256, 256
      %63 = vsyncadd [#allocation6], %s62
      %s64 = sshll.u32 [#allocation7], 4
      %s65 = int_to_ptr.vmem [resolvable:$true] %s64
      %70 = dma.hbm_to_vmem [thread:$0]  %s4, 256, %s65, [#allocation6], 128, 128, 8
    $region21: #{gcn_forward.1} parent=1 // pred_fallthru
      _
    // Predicated region
    $region22: #{gcn_forward.1} parent=1 // pred_check
      _
    $region23: #{gcn_forward.1} parent=1 // pred_check_branch
      %72 = sbr.rel (0) target = $region25
    $region24: #{gcn_forward.1} parent=1 // pred_region
      %s74 = ssub.s32 512, 512
      %75 = vsyncadd [#allocation9], %s74
      %s76 = sshll.u32 [#allocation8], 4
      %s77 = int_to_ptr.vmem [resolvable:$true] %s76
      %82 = dma.hbm_to_vmem [thread:$0]  %s5, 512, %s77, [#allocation9], 128, 128, 8
    $region25: #{gcn_forward.1} parent=1 // pred_fallthru
      _
    // Predicated region
    $region26: #{gcn_forward.1} parent=1 // pred_check
      _
    $region27: #{gcn_forward.1} parent=1 // pred_check_branch
      %84 = sbr.rel (0) target = $region29
    $region28: #{gcn_forward.1} parent=1 // pred_region
      _
    $region29: #{gcn_forward.1} parent=1 // pred_fallthru
      _
    // Predicated region
    $region30: #{gcn_forward.1} parent=1 // pred_check
      _
    $region31: #{gcn_forward.1} parent=1 // pred_check_branch
      %86 = sbr.rel (0) target = $region33
    $region32: #{gcn_forward.1} parent=1 // pred_region
      _
    $region33: #{gcn_forward.1} parent=1 // pred_fallthru
      _
    // Predicated region
    $region34: #{gcn_forward.1} parent=1 // pred_check
      _
    $region35: #{gcn_forward.1} parent=1 // pred_check_branch
      %88 = sbr.rel (0) target = $region37
    $region36: #{gcn_forward.1} parent=1 // pred_region
      %s90 = ssub.s32 16, 16
      %91 = vsyncadd [#allocation9], %s90
      %s93 = sshll.u32 [#allocation10], 4
      %s94 = int_to_ptr.vmem [resolvable:$true] %s93
      %96 = dma.hbm_to_vmem [thread:$0]  %s8, 16, %s94, [#allocation9]
    $region37: #{gcn_forward.1} parent=1 // pred_fallthru
      _
    // Predicated region
    $region38: #{gcn_forward.1} parent=1 // pred_check
      _
    $region39: #{gcn_forward.1} parent=1 // pred_check_branch
      %98 = sbr.rel (0) target = $region41
    $region40: #{gcn_forward.1} parent=1 // pred_region
      _
    $region41: #{gcn_forward.1} parent=1 // pred_fallthru
      _
    // Predicated region
    $region42: #{gcn_forward.1} parent=1 // pred_check
      _
    $region43: #{gcn_forward.1} parent=1 // pred_check_branch
      %100 = sbr.rel (0) target = $region45
    $region44: #{gcn_forward.1} parent=1 // pred_region
      %s102 = ssub.s32 16, 16
      %103 = vsyncadd [#allocation12], %s102
      %s105 = sshll.u32 [#allocation11], 4
      %s106 = int_to_ptr.vmem [resolvable:$true] %s105
      %108 = dma.hbm_to_vmem [thread:$0]  %s10, 16, %s106, [#allocation12]
    $region45: #{gcn_forward.1} parent=1 // pred_fallthru
      _
    // Predicated region
    $region46: #{gcn_forward.1} parent=1 // pred_check
      _
    $region47: #{gcn_forward.1} parent=1 // pred_check_branch
      %110 = sbr.rel (0) target = $region49
    $region48: #{gcn_forward.1} parent=1 // pred_region
      %111 = dma.done [#allocation3], 256
    $region49: #{gcn_forward.1} parent=1 // pred_fallthru
      _
    // Predicated region
    $region50: #{gcn_forward.1} parent=1 // pred_check
      _
    $region51: #{gcn_forward.1} parent=1 // pred_check_branch
      %113 = sbr.rel (0) target = $region53
    $region52: #{gcn_forward.1} parent=1 // pred_region
      %114 = dma.done [#allocation6], 256
    $region53: #{gcn_forward.1} parent=1 // pred_fallthru
      _
    // Predicated region
    $region54: #{gcn_forward.1} parent=1 // pred_check
      _
    $region55: #{gcn_forward.1} parent=1 // pred_check_branch
      %116 = sbr.rel (0) target = $region57
    $region56: #{gcn_forward.1} parent=1 // pred_region
      %117 = dma.done [#allocation6], 256
    $region57: #{gcn_forward.1} parent=1 // pred_fallthru
      _
    // Predicated region
    $region58: #{gcn_forward.1} parent=1 // pred_check
      _
    $region59: #{gcn_forward.1} parent=1 // pred_check_branch
      %119 = sbr.rel (0) target = $region61
    $region60: #{gcn_forward.1} parent=1 // pred_region
      %120 = dma.done [#allocation9], 512
    $region61: #{gcn_forward.1} parent=1 // pred_fallthru
      _
    // Predicated region
    $region62: #{gcn_forward.1} parent=1 // pred_check
      _
    $region63: #{gcn_forward.1} parent=1 // pred_check_branch
      %122 = sbr.rel (0) target = $region65
    $region64: #{gcn_forward.1} parent=1 // pred_region
      %123 = dma.done [#allocation9], 16
    $region65: #{gcn_forward.1} parent=1 // pred_fallthru
      _
    // Predicated region
    $region66: #{gcn_forward.1} parent=1 // pred_check
      _
    $region67: #{gcn_forward.1} parent=1 // pred_check_branch
      %125 = sbr.rel (0) target = $region69
    $region68: #{gcn_forward.1} parent=1 // pred_region
      %126 = dma.done [#allocation12], 16
    $region69: #{gcn_forward.1} parent=1 // pred_fallthru
      _
    %v127 = vld [vmem:[#allocation2] sm:$0xff]
    %v128 = vld [vmem:[#allocation2 + $0x8] sm:$0xff]
    %vm129 = vcmask 130048
    %v130 = vsel %vm129, %v127, 0.0
    %131 = vadd.xlane.f32.xlu0 %v130
    %v132 = vpop.xlane.xlu0 %131
    %v133 = vsel %vm129, %v128, 0.0
    %134 = vadd.xlane.f32.xlu0 %v133
    %v135 = vpop.xlane.xlu0 %134
    %v136 = vadd.f32 %v130, %v133
    %v137 = vrot.slane %v136, 4
    %v138 = vadd.f32 %v136, %v137
    %v139 = vrot.slane %v138, 2
    %v140 = vadd.f32 %v138, %v139
    %v141 = vrot.slane %v140, 1
    %v142 = vadd.f32 %v140, %v141
    %v143 = vmax.f32 %v132, 1.0
    %v144 = vmax.f32 %v135, 1.0
    %v145 = vrsqrt.pop %v143
    %v146 = vrsqrt.pop %v144
    %v147 = vmax.f32 %v142, 1.0
    %v148 = vrsqrt.pop %v147
    %v149 = vmul.f32 %v145, %v127
    %v150 = vmul.f32 %v146, %v128
    %v151 = vmul.f32 %v149, %v148
    %v152 = vmul.f32 %v150, %v148
    %v153 = vld [vmem:[#allocation5] sm:$0xff]
    %v154 = vld [vmem:[#allocation5 + $0x8] sm:$0xff]
    %v155 = vld [vmem:[%s2] sm:$0xff]
    %v156 = vld [vmem:[%s2 + $0x8] sm:$0xff]
    %v157 = vld [vmem:[%s2 + $0x10] sm:$0xff]
    %v158 = vld [vmem:[%s2 + $0x18] sm:$0xff]
    %vm159 = vcmask 261120
    %v161 = vsel %vm159, %v153, 0
    %v164 = vsel %vm159, %v154, 0
    %166 = vmatprep.subr.mxu0 0.0
    %167 = vmatpush1.msra.mxu0 %v155
    %168 = vmatprep.subr.mxu0 0.0
    %169 = vmatpush1.msra.mxu0 %v156
    %170 = vmatprep.subr.mxu0 0.0
    %171 = vmatpush1.msra.mxu0 %v157
    %172 = vmatprep.subr.mxu0 0.0
    %173 = vmatpush1.msra.mxu0 %v158
    %174 = vmatprep.subr.mxu0 0.0
    %175 = vmatpush1.msra.mxu0 0.0
    %176 = vmatprep.subr.mxu0 0.0
    %177 = vmatpush1.msra.mxu0 0.0
    %178 = vmatprep.subr.mxu0 0.0
    %179 = vmatpush1.msra.mxu0 0.0
    %180 = vmatprep.subr.mxu0 0.0
    %181 = vmatpush1.msra.mxu0 0.0
    %182 = vmatprep.subr.mxu0 0.0
    %183 = vmatpush1.msra.mxu0 0.0
    %184 = vmatprep.subr.mxu0 0.0
    %185 = vmatpush1.msra.mxu0 0.0
    %186 = vmatprep.subr.mxu0 0.0
    %187 = vmatpush1.msra.mxu0 0.0
    %188 = vmatprep.subr.mxu0 0.0
    %189 = vmatpush1.msra.mxu0 0.0
    %190 = vmatprep.subr.mxu0 0.0
    %191 = vmatpush1.msra.mxu0 0.0
    %192 = vmatprep.subr.mxu0 0.0
    %193 = vmatpush1.msra.mxu0 0.0
    %194 = vmatprep.subr.mxu0 0.0
    %195 = vmatpush1.msra.mxu0 0.0
    %196 = vmatprep.subr.mxu0 0.0
    %197 = vmatpush1.msra.mxu0 0.0
    %198 = vmatprep.subr.mxu0 0.0
    %199 = vmatpush1.msra.mxu0 0.0
    %200 = vmatprep.subr.mxu0 0.0
    %201 = vmatpush1.msra.mxu0 0.0
    %202 = vmatprep.subr.mxu0 0.0
    %203 = vmatpush1.msra.mxu0 0.0
    %204 = vmatprep.subr.mxu0 0.0
    %205 = vmatpush1.msra.mxu0 0.0
    %206 = vmatprep.subr.mxu0 0.0
    %207 = vmatpush1.msra.mxu0 0.0
    %208 = vmatprep.subr.mxu0 0.0
    %209 = vmatpush1.msra.mxu0 0.0
    %210 = vmatprep.subr.mxu0 0.0
    %211 = vmatpush1.msra.mxu0 0.0
    %212 = vmatprep.subr.mxu0 0.0
    %213 = vmatpush1.msra.mxu0 0.0
    %214 = vmatprep.subr.mxu0 0.0
    %215 = vmatpush1.msra.mxu0 0.0
    %216 = vmatprep.subr.mxu0 0.0
    %217 = vmatpush1.msra.mxu0 0.0
    %218 = vmatprep.subr.mxu0 0.0
    %219 = vmatpush1.msra.mxu0 0.0
    %220 = vmatprep.subr.mxu0 0.0
    %221 = vmatpush1.msra.mxu0 0.0
    %222 = vmatprep.subr.mxu0 0.0
    %223 = vmatpush1.msra.mxu0 0.0
    %224 = vmatprep.subr.mxu0 0.0
    %225 = vmatpush1.msra.mxu0 0.0
    %226 = vmatprep.subr.mxu0 0.0
    %227 = vmatpush1.msra.mxu0 0.0
    %228 = vmatprep.subr.mxu0 0.0
    %229 = vmatpush1.msra.mxu0 0.0
    %230 = vmatprep.mubr.f32.mxu0 0.0
    %231 = vmatmul.mubr.f32.gmra.mrb[0].mxu0 %v161
    %v232 = vpop.f32.mrb[0].mxu0
    %v233 = vadd.f32 0.0, %v232
    %v234 = vpop.f32.mrb[0].mxu0
    %235 = vmatprep.mubr.f32.mxu0 0.0
    %236 = vmatmul.mubr.f32.gmra.mrb[0].mxu0 %v164
    %v237 = vpop.f32.mrb[0].mxu0
    %v238 = vadd.f32 0.0, %v237
    %v239 = vpop.f32.mrb[0].mxu0
    %240 = vdwg.mxu0
    %v241 = vld [vmem:[%s3] sm:$0x1]
    %v243 = vlaneseq
    %v244 = vshrl.u32 %v243, 7
    %v245 = vsub.s32 0, %v244
    %v246 = vrot.slane %v241, %v245
    %v249 = vsel %vm129, %v151, 0
    %v252 = vsel %vm129, %v152, 0
    %254 = vmatprep.subr.mxu0 0.0
    %255 = vmatpush1.msra.mxu0 %v233
    %256 = vmatprep.subr.mxu0 0.0
    %257 = vmatpush1.msra.mxu0 %v238
    %258 = vmatprep.subr.mxu0 0.0
    %259 = vmatpush1.msra.mxu0 0.0
    %260 = vmatprep.subr.mxu0 0.0
    %261 = vmatpush1.msra.mxu0 0.0
    %262 = vmatprep.subr.mxu0 0.0
    %263 = vmatpush1.msra.mxu0 0.0
    %264 = vmatprep.subr.mxu0 0.0
    %265 = vmatpush1.msra.mxu0 0.0
    %266 = vmatprep.subr.mxu0 0.0
    %267 = vmatpush1.msra.mxu0 0.0
    %268 = vmatprep.subr.mxu0 0.0
    %269 = vmatpush1.msra.mxu0 0.0
    %270 = vmatprep.subr.mxu0 0.0
    %271 = vmatpush1.msra.mxu0 0.0
    %272 = vmatprep.subr.mxu0 0.0
    %273 = vmatpush1.msra.mxu0 0.0
    %274 = vmatprep.subr.mxu0 0.0
    %275 = vmatpush1.msra.mxu0 0.0
    %276 = vmatprep.subr.mxu0 0.0
    %277 = vmatpush1.msra.mxu0 0.0
    %278 = vmatprep.subr.mxu0 0.0
    %279 = vmatpush1.msra.mxu0 0.0
    %280 = vmatprep.subr.mxu0 0.0
    %281 = vmatpush1.msra.mxu0 0.0
    %282 = vmatprep.subr.mxu0 0.0
    %283 = vmatpush1.msra.mxu0 0.0
    %284 = vmatprep.subr.mxu0 0.0
    %285 = vmatpush1.msra.mxu0 0.0
    %286 = vmatprep.subr.mxu0 0.0
    %287 = vmatpush1.msra.mxu0 0.0
    %288 = vmatprep.subr.mxu0 0.0
    %289 = vmatpush1.msra.mxu0 0.0
    %290 = vmatprep.subr.mxu0 0.0
    %291 = vmatpush1.msra.mxu0 0.0
    %292 = vmatprep.subr.mxu0 0.0
    %293 = vmatpush1.msra.mxu0 0.0
    %294 = vmatprep.subr.mxu0 0.0
    %295 = vmatpush1.msra.mxu0 0.0
    %296 = vmatprep.subr.mxu0 0.0
    %297 = vmatpush1.msra.mxu0 0.0
    %298 = vmatprep.subr.mxu0 0.0
    %299 = vmatpush1.msra.mxu0 0.0
    %300 = vmatprep.subr.mxu0 0.0
    %301 = vmatpush1.msra.mxu0 0.0
    %302 = vmatprep.subr.mxu0 0.0
    %303 = vmatpush1.msra.mxu0 0.0
    %304 = vmatprep.subr.mxu0 0.0
    %305 = vmatpush1.msra.mxu0 0.0
    %306 = vmatprep.subr.mxu0 0.0
    %307 = vmatpush1.msra.mxu0 0.0
    %308 = vmatprep.subr.mxu0 0.0
    %309 = vmatpush1.msra.mxu0 0.0
    %310 = vmatprep.subr.mxu0 0.0
    %311 = vmatpush1.msra.mxu0 0.0
    %312 = vmatprep.subr.mxu0 0.0
    %313 = vmatpush1.msra.mxu0 0.0
    %314 = vmatprep.subr.mxu0 0.0
    %315 = vmatpush1.msra.mxu0 0.0
    %316 = vmatprep.subr.mxu0 0.0
    %317 = vmatpush1.msra.mxu0 0.0
    %318 = vmatprep.mubr.f32.mxu0 0.0
    %319 = vmatmul.mubr.f32.gmra.mrb[0].mxu0 %v249
    %v320 = vpop.f32.mrb[0].mxu0
    %v321 = vadd.f32 %v246, %v320
    %v322 = vpop.f32.mrb[0].mxu0
    %323 = vmatprep.mubr.f32.mxu0 0.0
    %324 = vmatmul.mubr.f32.gmra.mrb[0].mxu0 %v252
    %v325 = vpop.f32.mrb[0].mxu0
    %v326 = vadd.f32 %v246, %v325
    %v327 = vpop.f32.mrb[0].mxu0
    %328 = vdwg.mxu0
    %v329 = vmax.f32 %v321, 0.0
    %v330 = vmax.f32 %v326, 0.0
    %331 = vst.msk [vmem:[#allocation13] sm:$0xff] %vm159, %v329
    %332 = vst.msk [vmem:[#allocation13 + $0x8] sm:$0xff] %vm159, %v330
    %v333 = vmul.f32 %v329, %v329
    %v334 = vmul.f32 %v330, %v330
    %v335 = vsel %vm159, %v333, 0.0
    %336 = vadd.xlane.f32.xlu0 %v335
    %v337 = vpop.xlane.xlu0 %336
    %v338 = vsel %vm159, %v334, 0.0
    %339 = vadd.xlane.f32.xlu0 %v338
    %v340 = vpop.xlane.xlu0 %339
    %v341 = vadd.f32 %v337, 1e-12
    %v342 = vadd.f32 %v340, 1e-12
    %v343 = vrsqrt.pop %v341
    %v344 = vrsqrt.pop %v342
    %v345 = vmul.f32 %v329, %v343
    %v346 = vmul.f32 %v330, %v344
    %v347 = vld [vmem:[#allocation7] sm:$0xff]
    %v348 = vld [vmem:[#allocation7 + $0x8] sm:$0xff]
    %v349 = vmul.f32 %v347, %v347
    %v350 = vmul.f32 %v348, %v348
    %v351 = vsel %vm159, %v349, 0.0
    %352 = vadd.xlane.f32.xlu0 %v351
    %v353 = vpop.xlane.xlu0 %352
    %v354 = vsel %vm159, %v350, 0.0
    %355 = vadd.xlane.f32.xlu0 %v354
    %v356 = vpop.xlane.xlu0 %355
    %v357 = vadd.f32 %v353, 1e-12
    %v358 = vadd.f32 %v356, 1e-12
    %v359 = vrsqrt.pop %v357
    %v360 = vrsqrt.pop %v358
    %v361 = vmul.f32 %v347, %v359
    %v362 = vmul.f32 %v348, %v360
    %v364 = vsel %vm159, %v345, 0
    %v367 = vsel %vm159, %v346, 0
    %v370 = vsel %vm159, %v361, 0
    %v373 = vsel %vm159, %v362, 0
    %375 = vmatprep.subr.mxu0 0.0
    %376 = vmatpush1.xpose.msra.mxu0 %v370
    %377 = vmatprep.subr.mxu0 0.0
    %378 = vmatpush1.xpose.msra.mxu0 %v373
    %379 = vmatprep.subr.mxu0 0.0
    %380 = vmatpush1.xpose.msra.mxu0 0.0
    %381 = vmatprep.subr.mxu0 0.0
    %382 = vmatpush1.xpose.msra.mxu0 0.0
    %383 = vmatprep.subr.mxu0 0.0
    %384 = vmatpush1.xpose.msra.mxu0 0.0
    %385 = vmatprep.subr.mxu0 0.0
    %386 = vmatpush1.xpose.msra.mxu0 0.0
    %387 = vmatprep.subr.mxu0 0.0
    %388 = vmatpush1.xpose.msra.mxu0 0.0
    %389 = vmatprep.subr.mxu0 0.0
    %390 = vmatpush1.xpose.msra.mxu0 0.0
    %391 = vmatprep.subr.mxu0 0.0
    %392 = vmatpush1.xpose.msra.mxu0 0.0
    %393 = vmatprep.subr.mxu0 0.0
    %394 = vmatpush1.xpose.msra.mxu0 0.0
    %395 = vmatprep.subr.mxu0 0.0
    %396 = vmatpush1.xpose.msra.mxu0 0.0
    %397 = vmatprep.subr.mxu0 0.0
    %398 = vmatpush1.xpose.msra.mxu0 0.0
    %399 = vmatprep.subr.mxu0 0.0
    %400 = vmatpush1.xpose.msra.mxu0 0.0
    %401 = vmatprep.subr.mxu0 0.0
    %402 = vmatpush1.xpose.msra.mxu0 0.0
    %403 = vmatprep.subr.mxu0 0.0
    %404 = vmatpush1.xpose.msra.mxu0 0.0
    %405 = vmatprep.subr.mxu0 0.0
    %406 = vmatpush1.xpose.msra.mxu0 0.0
    %407 = vmatprep.subr.mxu0 0.0
    %408 = vmatpush1.xpose.msra.mxu0 0.0
    %409 = vmatprep.subr.mxu0 0.0
    %410 = vmatpush1.xpose.msra.mxu0 0.0
    %411 = vmatprep.subr.mxu0 0.0
    %412 = vmatpush1.xpose.msra.mxu0 0.0
    %413 = vmatprep.subr.mxu0 0.0
    %414 = vmatpush1.xpose.msra.mxu0 0.0
    %415 = vmatprep.subr.mxu0 0.0
    %416 = vmatpush1.xpose.msra.mxu0 0.0
    %417 = vmatprep.subr.mxu0 0.0
    %418 = vmatpush1.xpose.msra.mxu0 0.0
    %419 = vmatprep.subr.mxu0 0.0
    %420 = vmatpush1.xpose.msra.mxu0 0.0
    %421 = vmatprep.subr.mxu0 0.0
    %422 = vmatpush1.xpose.msra.mxu0 0.0
    %423 = vmatprep.subr.mxu0 0.0
    %424 = vmatpush1.xpose.msra.mxu0 0.0
    %425 = vmatprep.subr.mxu0 0.0
    %426 = vmatpush1.xpose.msra.mxu0 0.0
    %427 = vmatprep.subr.mxu0 0.0
    %428 = vmatpush1.xpose.msra.mxu0 0.0
    %429 = vmatprep.subr.mxu0 0.0
    %430 = vmatpush1.xpose.msra.mxu0 0.0
    %431 = vmatprep.subr.mxu0 0.0
    %432 = vmatpush1.xpose.msra.mxu0 0.0
    %433 = vmatprep.subr.mxu0 0.0
    %434 = vmatpush1.xpose.msra.mxu0 0.0
    %435 = vmatprep.subr.mxu0 0.0
    %436 = vmatpush1.xpose.msra.mxu0 0.0
    %437 = vmatprep.subr.mxu0 0.0
    %438 = vmatpush1.xpose.msra.mxu0 0.0
    %439 = vmatprep.mubr.f32.mxu0 0.0
    %440 = vmatmul.mubr.f32.gmra.mrb[0].mxu0 %v364
    %v441 = vpop.f32.mrb[0].mxu0
    %v442 = vadd.f32 0.0, %v441
    %v443 = vpop.f32.mrb[0].mxu0
    %444 = vmatprep.mubr.f32.mxu0 0.0
    %445 = vmatmul.mubr.f32.gmra.mrb[0].mxu0 %v367
    %v446 = vpop.f32.mrb[0].mxu0
    %v447 = vadd.f32 0.0, %v446
    %v448 = vpop.f32.mrb[0].mxu0
    %449 = vdwg.mxu0
    %v450 = vsel %vm129, %v442, -inf
    %451 = vmax.xlane.f32.xlu0 %v450
    %v452 = vpop.xlane.xlu0 %451
    %v453 = vsel %vm129, %v447, -inf
    %454 = vmax.xlane.f32.xlu0 %v453
    %v455 = vpop.xlane.xlu0 %454
    %v456 = vlaneseq
    %v457 = vand.u32 %v456, 127
    %vm458 = vcmp.ge.f32.partialorder %v442, %v452
    %vm459 = vcmp.ge.f32.partialorder %v447, %v455
    %v460 = vsel %vm458, %v457, 16
    %v461 = vsel %vm459, %v457, 16
    %v462 = vsel %vm129, %v460, 2147483647
    %v463 = vand.u32 %v462, 65535
    %v464 = vshra.s32 %v462, 16
    %v465 = vcvt.s32.f32 %v463
    %v466 = vcvt.s32.f32 %v464
    %467 = vmin.xlane.f32.xlu0 %v466
    %v468 = vpop.xlane.xlu0 %467
    %vm469 = vcmp.eq.f32.partialorder %v466, %v468
    %v470 = vsel %vm469, %v465, inf
    %471 = vmin.xlane.f32.xlu0 %v470
    %v472 = vpop.xlane.xlu0 %471
    %v473 = vcvt.f32.s32 %v472
    %v474 = vcvt.f32.s32 %v468
    %v475 = vshll.u32 %v474, 16
    %v476 = vadd.s32 %v475, %v473
    %v477 = vsel %vm129, %v461, 2147483647
    %v478 = vand.u32 %v477, 65535
    %v479 = vshra.s32 %v477, 16
    %v480 = vcvt.s32.f32 %v478
    %v481 = vcvt.s32.f32 %v479
    %482 = vmin.xlane.f32.xlu0 %v481
    %v483 = vpop.xlane.xlu0 %482
    %vm484 = vcmp.eq.f32.partialorder %v481, %v483
    %v485 = vsel %vm484, %v480, inf
    %486 = vmin.xlane.f32.xlu0 %v485
    %v487 = vpop.xlane.xlu0 %486
    %v488 = vcvt.f32.s32 %v487
    %v489 = vcvt.f32.s32 %v483
    %v490 = vshll.u32 %v489, 16
    %v491 = vadd.s32 %v490, %v488
    %vm492 = vcmp.eq.s32.totalorder %v457, %v476
    %vm493 = vcmp.eq.s32.totalorder %v457, %v491
    %v494 = vsel %vm492, 1, 0
    %v495 = vsel %vm493, 1, 0
    %v496 = vcvt.s32.f32 %v494
    %v497 = vcvt.s32.f32 %v495
    %v499 = vsel %vm129, %v496, 0
    %v502 = vsel %vm129, %v497, 0
    %504 = vmatprep.subr.mxu0 0.0
    %505 = vmatpush1.msra.mxu0 %v361
    %506 = vmatprep.subr.mxu0 0.0
    %507 = vmatpush1.msra.mxu0 %v362
    %508 = vmatprep.subr.mxu0 0.0
    %509 = vmatpush1.msra.mxu0 0.0
    %510 = vmatprep.subr.mxu0 0.0
    %511 = vmatpush1.msra.mxu0 0.0
    %512 = vmatprep.subr.mxu0 0.0
    %513 = vmatpush1.msra.mxu0 0.0
    %514 = vmatprep.subr.mxu0 0.0
    %515 = vmatpush1.msra.mxu0 0.0
    %516 = vmatprep.subr.mxu0 0.0
    %517 = vmatpush1.msra.mxu0 0.0
    %518 = vmatprep.subr.mxu0 0.0
    %519 = vmatpush1.msra.mxu0 0.0
    %520 = vmatprep.subr.mxu0 0.0
    %521 = vmatpush1.msra.mxu0 0.0
    %522 = vmatprep.subr.mxu0 0.0
    %523 = vmatpush1.msra.mxu0 0.0
    %524 = vmatprep.subr.mxu0 0.0
    %525 = vmatpush1.msra.mxu0 0.0
    %526 = vmatprep.subr.mxu0 0.0
    %527 = vmatpush1.msra.mxu0 0.0
    %528 = vmatprep.subr.mxu0 0.0
    %529 = vmatpush1.msra.mxu0 0.0
    %530 = vmatprep.subr.mxu0 0.0
    %531 = vmatpush1.msra.mxu0 0.0
    %532 = vmatprep.subr.mxu0 0.0
    %533 = vmatpush1.msra.mxu0 0.0
    %534 = vmatprep.subr.mxu0 0.0
    %535 = vmatpush1.msra.mxu0 0.0
    %536 = vmatprep.subr.mxu0 0.0
    %537 = vmatpush1.msra.mxu0 0.0
    %538 = vmatprep.subr.mxu0 0.0
    %539 = vmatpush1.msra.mxu0 0.0
    %540 = vmatprep.subr.mxu0 0.0
    %541 = vmatpush1.msra.mxu0 0.0
    %542 = vmatprep.subr.mxu0 0.0
    %543 = vmatpush1.msra.mxu0 0.0
    %544 = vmatprep.subr.mxu0 0.0
    %545 = vmatpush1.msra.mxu0 0.0
    %546 = vmatprep.subr.mxu0 0.0
    %547 = vmatpush1.msra.mxu0 0.0
    %548 = vmatprep.subr.mxu0 0.0
    %549 = vmatpush1.msra.mxu0 0.0
    %550 = vmatprep.subr.mxu0 0.0
    %551 = vmatpush1.msra.mxu0 0.0
    %552 = vmatprep.subr.mxu0 0.0
    %553 = vmatpush1.msra.mxu0 0.0
    %554 = vmatprep.subr.mxu0 0.0
    %555 = vmatpush1.msra.mxu0 0.0
    %556 = vmatprep.subr.mxu0 0.0
    %557 = vmatpush1.msra.mxu0 0.0
    %558 = vmatprep.subr.mxu0 0.0
    %559 = vmatpush1.msra.mxu0 0.0
    %560 = vmatprep.subr.mxu0 0.0
    %561 = vmatpush1.msra.mxu0 0.0
    %562 = vmatprep.subr.mxu0 0.0
    %563 = vmatpush1.msra.mxu0 0.0
    %564 = vmatprep.subr.mxu0 0.0
    %565 = vmatpush1.msra.mxu0 0.0
    %566 = vmatprep.subr.mxu0 0.0
    %567 = vmatpush1.msra.mxu0 0.0
    %568 = vmatprep.mubr.f32.mxu0 0.0
    %569 = vmatmul.mubr.f32.gmra.mrb[0].mxu0 %v499
    %v570 = vpop.f32.mrb[0].mxu0
    %v571 = vadd.f32 0.0, %v570
    %v572 = vpop.f32.mrb[0].mxu0
    %573 = vmatprep.mubr.f32.mxu0 0.0
    %574 = vmatmul.mubr.f32.gmra.mrb[0].mxu0 %v502
    %v575 = vpop.f32.mrb[0].mxu0
    %v576 = vadd.f32 0.0, %v575
    %v577 = vpop.f32.mrb[0].mxu0
    %578 = vdwg.mxu0
    %579 = vst.msk [vmem:[#allocation14] sm:$0xff] %vm159, %v571
    %580 = vst.msk [vmem:[#allocation14 + $0x8] sm:$0xff] %vm159, %v576
    %581 = vst.msk [vmem:[#allocation17] sm:$0xff] %vm129, %v442
    %582 = vst.msk [vmem:[#allocation17 + $0x8] sm:$0xff] %vm129, %v447
    %583 = vst.msk [vmem:[#allocation19] sm:$0xff] %vm159, %v361
    %584 = vst.msk [vmem:[#allocation19 + $0x8] sm:$0xff] %vm159, %v362
    %v585 = vsub.f32 %v571, %v329
    %v586 = vsub.f32 %v576, %v330
    %v587 = vmul.f32 %v585, %v585
    %v588 = vmul.f32 %v586, %v586
    %v589 = vsel %vm159, %v587, 0.0
    %v590 = vsel %vm159, %v588, 0.0
    %v591 = vadd.f32 %v589, %v590
    %592 = vadd.xlane.f32.xlu0 %v591
    %v593 = vpop.xlane.xlu0 %592
    %v594 = vrot.slane %v593, 4
    %v595 = vadd.f32 %v593, %v594
    %v596 = vrot.slane %v595, 2
    %v597 = vadd.f32 %v595, %v596
    %v598 = vrot.slane %v597, 1
    %v599 = vadd.f32 %v597, %v598
    %s600 = vtos %v599
    %v601 = vstv %s600
    %v602 = vrcp.pop 512.0
    %v603 = vmul.f32 %v601, %v602
    %v604 = vmul.f32 %v603, 0.25
    %v605 = vld [vmem:[#allocation8] sm:$0xff]
    %v606 = vld [vmem:[#allocation8 + $0x8] sm:$0xff]
    %v607 = vld [vmem:[#allocation8 + $0x10] sm:$0xff]
    %v608 = vld [vmem:[#allocation8 + $0x18] sm:$0xff]
    %v609 = vld [vmem:[%s6] sm:$0x1]
    %v611 = vlaneseq
    %v612 = vshrl.u32 %v611, 7
    %v613 = vsub.s32 0, %v612
    %v614 = vrot.slane %v609, %v613
    %v617 = vsel %vm159, %v571, 0
    %v620 = vsel %vm159, %v576, 0
    %622 = vmatprep.subr.mxu0 0.0
    %623 = vmatpush1.msra.mxu0 %v605
    %624 = vmatprep.subr.mxu0 0.0
    %625 = vmatpush1.msra.mxu0 %v606
    %626 = vmatprep.subr.mxu0 0.0
    %627 = vmatpush1.msra.mxu0 %v607
    %628 = vmatprep.subr.mxu0 0.0
    %629 = vmatpush1.msra.mxu0 %v608
    %630 = vmatprep.subr.mxu0 0.0
    %631 = vmatpush1.msra.mxu0 0.0
    %632 = vmatprep.subr.mxu0 0.0
    %633 = vmatpush1.msra.mxu0 0.0
    %634 = vmatprep.subr.mxu0 0.0
    %635 = vmatpush1.msra.mxu0 0.0
    %636 = vmatprep.subr.mxu0 0.0
    %637 = vmatpush1.msra.mxu0 0.0
    %638 = vmatprep.subr.mxu0 0.0
    %639 = vmatpush1.msra.mxu0 0.0
    %640 = vmatprep.subr.mxu0 0.0
    %641 = vmatpush1.msra.mxu0 0.0
    %642 = vmatprep.subr.mxu0 0.0
    %643 = vmatpush1.msra.mxu0 0.0
    %644 = vmatprep.subr.mxu0 0.0
    %645 = vmatpush1.msra.mxu0 0.0
    %646 = vmatprep.subr.mxu0 0.0
    %647 = vmatpush1.msra.mxu0 0.0
    %648 = vmatprep.subr.mxu0 0.0
    %649 = vmatpush1.msra.mxu0 0.0
    %650 = vmatprep.subr.mxu0 0.0
    %651 = vmatpush1.msra.mxu0 0.0
    %652 = vmatprep.subr.mxu0 0.0
    %653 = vmatpush1.msra.mxu0 0.0
    %654 = vmatprep.subr.mxu0 0.0
    %655 = vmatpush1.msra.mxu0 0.0
    %656 = vmatprep.subr.mxu0 0.0
    %657 = vmatpush1.msra.mxu0 0.0
    %658 = vmatprep.subr.mxu0 0.0
    %659 = vmatpush1.msra.mxu0 0.0
    %660 = vmatprep.subr.mxu0 0.0
    %661 = vmatpush1.msra.mxu0 0.0
    %662 = vmatprep.subr.mxu0 0.0
    %663 = vmatpush1.msra.mxu0 0.0
    %664 = vmatprep.subr.mxu0 0.0
    %665 = vmatpush1.msra.mxu0 0.0
    %666 = vmatprep.subr.mxu0 0.0
    %667 = vmatpush1.msra.mxu0 0.0
    %668 = vmatprep.subr.mxu0 0.0
    %669 = vmatpush1.msra.mxu0 0.0
    %670 = vmatprep.subr.mxu0 0.0
    %671 = vmatpush1.msra.mxu0 0.0
    %672 = vmatprep.subr.mxu0 0.0
    %673 = vmatpush1.msra.mxu0 0.0
    %674 = vmatprep.subr.mxu0 0.0
    %675 = vmatpush1.msra.mxu0 0.0
    %676 = vmatprep.subr.mxu0 0.0
    %677 = vmatpush1.msra.mxu0 0.0
    %678 = vmatprep.subr.mxu0 0.0
    %679 = vmatpush1.msra.mxu0 0.0
    %680 = vmatprep.subr.mxu0 0.0
    %681 = vmatpush1.msra.mxu0 0.0
    %682 = vmatprep.subr.mxu0 0.0
    %683 = vmatpush1.msra.mxu0 0.0
    %684 = vmatprep.subr.mxu0 0.0
    %685 = vmatpush1.msra.mxu0 0.0
    %686 = vmatprep.mubr.f32.mxu0 0.0
    %687 = vmatmul.mubr.f32.gmra.mrb[0].mxu0 %v617
    %v688 = vpop.f32.mrb[0].mxu0
    %v689 = vadd.f32 %v614, %v688
    %v690 = vpop.f32.mrb[0].mxu0
    %691 = vmatprep.mubr.f32.mxu0 0.0
    %692 = vmatmul.mubr.f32.gmra.mrb[0].mxu0 %v620
    %v693 = vpop.f32.mrb[0].mxu0
    %v694 = vadd.f32 %v614, %v693
    %v695 = vpop.f32.mrb[0].mxu0
    %696 = vdwg.mxu0
    %699 = vrot.lane.b32.xlu0 %v689, 96
    %v700 = vpop.permute.xlu0 %699
    %701 = vrot.lane.b32.xlu0 %v694, 96
    %v702 = vpop.permute.xlu0 %701
    %v705 = vsub.f32 %v329, %v700
    %v706 = vsub.f32 %v330, %v702
    %v707 = vmul.f32 %v705, %v705
    %v708 = vmul.f32 %v706, %v706
    %v709 = vsel %vm159, %v707, 0.0
    %v710 = vsel %vm159, %v708, 0.0
    %v711 = vadd.f32 %v709, %v710
    %712 = vadd.xlane.f32.xlu0 %v711
    %v713 = vpop.xlane.xlu0 %712
    %v714 = vrot.slane %v713, 4
    %v715 = vadd.f32 %v713, %v714
    %v716 = vrot.slane %v715, 2
    %v717 = vadd.f32 %v715, %v716
    %v718 = vrot.slane %v717, 1
    %v719 = vadd.f32 %v717, %v718
    %s720 = vtos %v719
    %v721 = vstv %s720
    %v722 = vmul.f32 %v721, %v602
    %v723 = vmul.f32 %v722, 0.7
    %v724 = vsel %vm159, %v689, 0
    %v726 = vsel %vm159, %v694, 0
    %728 = vmatprep.subr.mxu0 0.0
    %729 = vmatpush1.xpose.msra.mxu0 %v724
    %730 = vmatprep.subr.mxu0 0.0
    %731 = vmatpush1.xpose.msra.mxu0 %v726
    %732 = vmatprep.subr.mxu0 0.0
    %733 = vmatpush1.xpose.msra.mxu0 0.0
    %734 = vmatprep.subr.mxu0 0.0
    %735 = vmatpush1.xpose.msra.mxu0 0.0
    %736 = vmatprep.subr.mxu0 0.0
    %737 = vmatpush1.xpose.msra.mxu0 0.0
    %738 = vmatprep.subr.mxu0 0.0
    %739 = vmatpush1.xpose.msra.mxu0 0.0
    %740 = vmatprep.subr.mxu0 0.0
    %741 = vmatpush1.xpose.msra.mxu0 0.0
    %742 = vmatprep.subr.mxu0 0.0
    %743 = vmatpush1.xpose.msra.mxu0 0.0
    %744 = vmatprep.subr.mxu0 0.0
    %745 = vmatpush1.xpose.msra.mxu0 0.0
    %746 = vmatprep.subr.mxu0 0.0
    %747 = vmatpush1.xpose.msra.mxu0 0.0
    %748 = vmatprep.subr.mxu0 0.0
    %749 = vmatpush1.xpose.msra.mxu0 0.0
    %750 = vmatprep.subr.mxu0 0.0
    %751 = vmatpush1.xpose.msra.mxu0 0.0
    %752 = vmatprep.subr.mxu0 0.0
    %753 = vmatpush1.xpose.msra.mxu0 0.0
    %754 = vmatprep.subr.mxu0 0.0
    %755 = vmatpush1.xpose.msra.mxu0 0.0
    %756 = vmatprep.subr.mxu0 0.0
    %757 = vmatpush1.xpose.msra.mxu0 0.0
    %758 = vmatprep.subr.mxu0 0.0
    %759 = vmatpush1.xpose.msra.mxu0 0.0
    %760 = vmatprep.subr.mxu0 0.0
    %761 = vmatpush1.xpose.msra.mxu0 0.0
    %762 = vmatprep.subr.mxu0 0.0
    %763 = vmatpush1.xpose.msra.mxu0 0.0
    %764 = vmatprep.subr.mxu0 0.0
    %765 = vmatpush1.xpose.msra.mxu0 0.0
    %766 = vmatprep.subr.mxu0 0.0
    %767 = vmatpush1.xpose.msra.mxu0 0.0
    %768 = vmatprep.subr.mxu0 0.0
    %769 = vmatpush1.xpose.msra.mxu0 0.0
    %770 = vmatprep.subr.mxu0 0.0
    %771 = vmatpush1.xpose.msra.mxu0 0.0
    %772 = vmatprep.subr.mxu0 0.0
    %773 = vmatpush1.xpose.msra.mxu0 0.0
    %774 = vmatprep.subr.mxu0 0.0
    %775 = vmatpush1.xpose.msra.mxu0 0.0
    %776 = vmatprep.subr.mxu0 0.0
    %777 = vmatpush1.xpose.msra.mxu0 0.0
    %778 = vmatprep.subr.mxu0 0.0
    %779 = vmatpush1.xpose.msra.mxu0 0.0
    %780 = vmatprep.subr.mxu0 0.0
    %781 = vmatpush1.xpose.msra.mxu0 0.0
    %782 = vmatprep.subr.mxu0 0.0
    %783 = vmatpush1.xpose.msra.mxu0 0.0
    %784 = vmatprep.subr.mxu0 0.0
    %785 = vmatpush1.xpose.msra.mxu0 0.0
    %786 = vmatprep.subr.mxu0 0.0
    %787 = vmatpush1.xpose.msra.mxu0 0.0
    %788 = vmatprep.subr.mxu0 0.0
    %789 = vmatpush1.xpose.msra.mxu0 0.0
    %790 = vmatprep.subr.mxu0 0.0
    %791 = vmatpush1.xpose.msra.mxu0 0.0
    %792 = vmatprep.mubr.f32.mxu0 0.0
    %793 = vmatmul.mubr.f32.gmra.mrb[0].mxu0 %v724
    %v794 = vpop.f32.mrb[0].mxu0
    %v795 = vadd.f32 0.0, %v794
    %v796 = vpop.f32.mrb[0].mxu0
    %797 = vmatprep.mubr.f32.mxu0 0.0
    %798 = vmatmul.mubr.f32.gmra.mrb[0].mxu0 %v726
    %v799 = vpop.f32.mrb[0].mxu0
    %v800 = vadd.f32 0.0, %v799
    %v801 = vpop.f32.mrb[0].mxu0
    %802 = vdwg.mxu0
    %v803 = vsel %vm129, %v795, inf
    %v804 = vsel %vm129, %v800, inf
    %v805 = vmin.f32 %v803, %v804
    %806 = vmin.xlane.f32.xlu0 %v805
    %v807 = vpop.xlane.xlu0 %806
    %v808 = vrot.slane %v807, 4
    %v809 = vmin.f32 %v807, %v808
    %v810 = vrot.slane %v809, 2
    %v811 = vmin.f32 %v809, %v810
    %v812 = vrot.slane %v811, 1
    %v813 = vmin.f32 %v811, %v812
    %s814 = vtos %v813
    %v815 = vstv %s814
    %v816 = vsel %vm129, %v795, -inf
    %v817 = vsel %vm129, %v800, -inf
    %v818 = vmax.f32 %v816, %v817
    %819 = vmax.xlane.f32.xlu0 %v818
    %v820 = vpop.xlane.xlu0 %819
    %v821 = vrot.slane %v820, 4
    %v822 = vmax.f32 %v820, %v821
    %v823 = vrot.slane %v822, 2
    %v824 = vmax.f32 %v822, %v823
    %v825 = vrot.slane %v824, 1
    %v826 = vmax.f32 %v824, %v825
    %s827 = vtos %v826
    %v828 = vstv %s827
    %v829 = vsub.f32 %v795, %v815
    %v830 = vsub.f32 %v800, %v815
    %v831 = vsub.f32 %v828, %v815
    %v832 = vmax.f32 %v831, 1e-12
    %v833 = vrcp.pop %v832
    %v834 = vmul.f32 %v829, %v833
    %v835 = vmul.f32 %v830, %v833
    %v836 = vsub.f32 %v127, %v834
    %v837 = vsub.f32 %v128, %v835
    %v838 = vmul.f32 %v836, %v836
    %v839 = vmul.f32 %v837, %v837
    %v840 = vsel %vm129, %v838, 0.0
    %v841 = vsel %vm129, %v839, 0.0
    %v842 = vadd.f32 %v840, %v841
    %843 = vadd.xlane.f32.xlu0 %v842
    %v844 = vpop.xlane.xlu0 %843
    %v845 = vrot.slane %v844, 4
    %v846 = vadd.f32 %v844, %v845
    %v847 = vrot.slane %v846, 2
    %v848 = vadd.f32 %v846, %v847
    %v849 = vrot.slane %v848, 1
    %v850 = vadd.f32 %v848, %v849
    %s851 = vtos %v850
    %v852 = vstv %s851
    %v853 = vrcp.pop 256.0
    %v854 = vmul.f32 %v852, %v853
    %v855 = vrsqrt.pop %v854
    %v856 = vmul.f32 %v854, %v855
    %vm857 = vcmp.eq.f32.partialorder %v854, inf
    %v858 = vsel %vm857, %v854, %v856
    %vm859 = vcmp.eq.f32.partialorder %v854, 0.0
    %v860 = vand.u32 %v854, 2147483648
    %v861 = vsel %vm859, %v860, %v858
    %v862 = vmul.f32 %v861, 0.3
    %v863 = vld [vmem:[%s7] sm:$0xff]
    %v864 = vld [vmem:[%s7 + $0x8] sm:$0xff]
    %v865 = vld [vmem:[%s7 + $0x10] sm:$0xff]
    %v866 = vld [vmem:[%s7 + $0x18] sm:$0xff]
    %867 = vmatprep.subr.mxu0 0.0
    %868 = vmatpush1.msra.mxu0 %v863
    %869 = vmatprep.subr.mxu0 0.0
    %870 = vmatpush1.msra.mxu0 %v864
    %871 = vmatprep.subr.mxu0 0.0
    %872 = vmatpush1.msra.mxu0 %v865
    %873 = vmatprep.subr.mxu0 0.0
    %874 = vmatpush1.msra.mxu0 %v866
    %875 = vmatprep.subr.mxu0 0.0
    %876 = vmatpush1.msra.mxu0 0.0
    %877 = vmatprep.subr.mxu0 0.0
    %878 = vmatpush1.msra.mxu0 0.0
    %879 = vmatprep.subr.mxu0 0.0
    %880 = vmatpush1.msra.mxu0 0.0
    %881 = vmatprep.subr.mxu0 0.0
    %882 = vmatpush1.msra.mxu0 0.0
    %883 = vmatprep.subr.mxu0 0.0
    %884 = vmatpush1.msra.mxu0 0.0
    %885 = vmatprep.subr.mxu0 0.0
    %886 = vmatpush1.msra.mxu0 0.0
    %887 = vmatprep.subr.mxu0 0.0
    %888 = vmatpush1.msra.mxu0 0.0
    %889 = vmatprep.subr.mxu0 0.0
    %890 = vmatpush1.msra.mxu0 0.0
    %891 = vmatprep.subr.mxu0 0.0
    %892 = vmatpush1.msra.mxu0 0.0
    %893 = vmatprep.subr.mxu0 0.0
    %894 = vmatpush1.msra.mxu0 0.0
    %895 = vmatprep.subr.mxu0 0.0
    %896 = vmatpush1.msra.mxu0 0.0
    %897 = vmatprep.subr.mxu0 0.0
    %898 = vmatpush1.msra.mxu0 0.0
    %899 = vmatprep.subr.mxu0 0.0
    %900 = vmatpush1.msra.mxu0 0.0
    %901 = vmatprep.subr.mxu0 0.0
    %902 = vmatpush1.msra.mxu0 0.0
    %903 = vmatprep.subr.mxu0 0.0
    %904 = vmatpush1.msra.mxu0 0.0
    %905 = vmatprep.subr.mxu0 0.0
    %906 = vmatpush1.msra.mxu0 0.0
    %907 = vmatprep.subr.mxu0 0.0
    %908 = vmatpush1.msra.mxu0 0.0
    %909 = vmatprep.subr.mxu0 0.0
    %910 = vmatpush1.msra.mxu0 0.0
    %911 = vmatprep.subr.mxu0 0.0
    %912 = vmatpush1.msra.mxu0 0.0
    %913 = vmatprep.subr.mxu0 0.0
    %914 = vmatpush1.msra.mxu0 0.0
    %915 = vmatprep.subr.mxu0 0.0
    %916 = vmatpush1.msra.mxu0 0.0
    %917 = vmatprep.subr.mxu0 0.0
    %918 = vmatpush1.msra.mxu0 0.0
    %919 = vmatprep.subr.mxu0 0.0
    %920 = vmatpush1.msra.mxu0 0.0
    %921 = vmatprep.subr.mxu0 0.0
    %922 = vmatpush1.msra.mxu0 0.0
    %923 = vmatprep.subr.mxu0 0.0
    %924 = vmatpush1.msra.mxu0 0.0
    %925 = vmatprep.subr.mxu0 0.0
    %926 = vmatpush1.msra.mxu0 0.0
    %927 = vmatprep.subr.mxu0 0.0
    %928 = vmatpush1.msra.mxu0 0.0
    %929 = vmatprep.subr.mxu0 0.0
    %930 = vmatpush1.msra.mxu0 0.0
    %931 = vmatprep.mubr.f32.mxu0 0.0
    %932 = vmatmul.mubr.f32.gmra.mrb[0].mxu0 %v724
    %v933 = vpop.f32.mrb[0].mxu0
    %v934 = vadd.f32 0.0, %v933
    %v935 = vpop.f32.mrb[0].mxu0
    %936 = vmatprep.mubr.f32.mxu0 0.0
    %937 = vmatmul.mubr.f32.gmra.mrb[0].mxu0 %v726
    %v938 = vpop.f32.mrb[0].mxu0
    %v939 = vadd.f32 0.0, %v938
    %v940 = vpop.f32.mrb[0].mxu0
    %941 = vdwg.mxu0
    %v942 = vld [vmem:[#allocation10] sm:$0x1]
    %v944 = vlaneseq
    %v945 = vshrl.u32 %v944, 7
    %v946 = vsub.s32 0, %v945
    %v947 = vrot.slane %v942, %v946
    %949 = vmatprep.subr.mxu0 0.0
    %950 = vmatpush1.msra.mxu0 %v934
    %951 = vmatprep.subr.mxu0 0.0
    %952 = vmatpush1.msra.mxu0 %v939
    %953 = vmatprep.subr.mxu0 0.0
    %954 = vmatpush1.msra.mxu0 0.0
    %955 = vmatprep.subr.mxu0 0.0
    %956 = vmatpush1.msra.mxu0 0.0
    %957 = vmatprep.subr.mxu0 0.0
    %958 = vmatpush1.msra.mxu0 0.0
    %959 = vmatprep.subr.mxu0 0.0
    %960 = vmatpush1.msra.mxu0 0.0
    %961 = vmatprep.subr.mxu0 0.0
    %962 = vmatpush1.msra.mxu0 0.0
    %963 = vmatprep.subr.mxu0 0.0
    %964 = vmatpush1.msra.mxu0 0.0
    %965 = vmatprep.subr.mxu0 0.0
    %966 = vmatpush1.msra.mxu0 0.0
    %967 = vmatprep.subr.mxu0 0.0
    %968 = vmatpush1.msra.mxu0 0.0
    %969 = vmatprep.subr.mxu0 0.0
    %970 = vmatpush1.msra.mxu0 0.0
    %971 = vmatprep.subr.mxu0 0.0
    %972 = vmatpush1.msra.mxu0 0.0
    %973 = vmatprep.subr.mxu0 0.0
    %974 = vmatpush1.msra.mxu0 0.0
    %975 = vmatprep.subr.mxu0 0.0
    %976 = vmatpush1.msra.mxu0 0.0
    %977 = vmatprep.subr.mxu0 0.0
    %978 = vmatpush1.msra.mxu0 0.0
    %979 = vmatprep.subr.mxu0 0.0
    %980 = vmatpush1.msra.mxu0 0.0
    %981 = vmatprep.subr.mxu0 0.0
    %982 = vmatpush1.msra.mxu0 0.0
    %983 = vmatprep.subr.mxu0 0.0
    %984 = vmatpush1.msra.mxu0 0.0
    %985 = vmatprep.subr.mxu0 0.0
    %986 = vmatpush1.msra.mxu0 0.0
    %987 = vmatprep.subr.mxu0 0.0
    %988 = vmatpush1.msra.mxu0 0.0
    %989 = vmatprep.subr.mxu0 0.0
    %990 = vmatpush1.msra.mxu0 0.0
    %991 = vmatprep.subr.mxu0 0.0
    %992 = vmatpush1.msra.mxu0 0.0
    %993 = vmatprep.subr.mxu0 0.0
    %994 = vmatpush1.msra.mxu0 0.0
    %995 = vmatprep.subr.mxu0 0.0
    %996 = vmatpush1.msra.mxu0 0.0
    %997 = vmatprep.subr.mxu0 0.0
    %998 = vmatpush1.msra.mxu0 0.0
    %999 = vmatprep.subr.mxu0 0.0
    %1000 = vmatpush1.msra.mxu0 0.0
    %1001 = vmatprep.subr.mxu0 0.0
    %1002 = vmatpush1.msra.mxu0 0.0
    %1003 = vmatprep.subr.mxu0 0.0
    %1004 = vmatpush1.msra.mxu0 0.0
    %1005 = vmatprep.subr.mxu0 0.0
    %1006 = vmatpush1.msra.mxu0 0.0
    %1007 = vmatprep.subr.mxu0 0.0
    %1008 = vmatpush1.msra.mxu0 0.0
    %1009 = vmatprep.subr.mxu0 0.0
    %1010 = vmatpush1.msra.mxu0 0.0
    %1011 = vmatprep.subr.mxu0 0.0
    %1012 = vmatpush1.msra.mxu0 0.0
    %1013 = vmatprep.mubr.f32.mxu0 0.0
    %1014 = vmatmul.mubr.f32.gmra.mrb[0].mxu0 %v249
    %v1015 = vpop.f32.mrb[0].mxu0
    %v1016 = vadd.f32 %v947, %v1015
    %v1017 = vpop.f32.mrb[0].mxu0
    %1018 = vmatprep.mubr.f32.mxu0 0.0
    %1019 = vmatmul.mubr.f32.gmra.mrb[0].mxu0 %v252
    %v1020 = vpop.f32.mrb[0].mxu0
    %v1021 = vadd.f32 %v947, %v1020
    %v1022 = vpop.f32.mrb[0].mxu0
    %1023 = vdwg.mxu0
    %v1024 = vmax.f32 %v1016, 0.0
    %v1025 = vmax.f32 %v1021, 0.0
    %1026 = vst.msk [vmem:[#allocation16] sm:$0xff] %vm159, %v1024
    %1027 = vst.msk [vmem:[#allocation16 + $0x8] sm:$0xff] %vm159, %v1025
    %v1028 = vld [vmem:[%s9] sm:$0xff]
    %v1029 = vld [vmem:[%s9 + $0x8] sm:$0xff]
    %v1030 = vld [vmem:[%s9 + $0x10] sm:$0xff]
    %v1031 = vld [vmem:[%s9 + $0x18] sm:$0xff]
    %v1032 = vld [vmem:[#allocation11] sm:$0x1]
    %v1034 = vlaneseq
    %v1035 = vshrl.u32 %v1034, 7
    %v1036 = vsub.s32 0, %v1035
    %v1037 = vrot.slane %v1032, %v1036
    %v1040 = vsel %vm159, %v1024, 0
    %v1043 = vsel %vm159, %v1025, 0
    %1045 = vmatprep.subr.mxu0 0.0
    %1046 = vmatpush1.msra.mxu0 %v1028
    %1047 = vmatprep.subr.mxu0 0.0
    %1048 = vmatpush1.msra.mxu0 %v1029
    %1049 = vmatprep.subr.mxu0 0.0
    %1050 = vmatpush1.msra.mxu0 %v1030
    %1051 = vmatprep.subr.mxu0 0.0
    %1052 = vmatpush1.msra.mxu0 %v1031
    %1053 = vmatprep.subr.mxu0 0.0
    %1054 = vmatpush1.msra.mxu0 0.0
    %1055 = vmatprep.subr.mxu0 0.0
    %1056 = vmatpush1.msra.mxu0 0.0
    %1057 = vmatprep.subr.mxu0 0.0
    %1058 = vmatpush1.msra.mxu0 0.0
    %1059 = vmatprep.subr.mxu0 0.0
    %1060 = vmatpush1.msra.mxu0 0.0
    %1061 = vmatprep.subr.mxu0 0.0
    %1062 = vmatpush1.msra.mxu0 0.0
    %1063 = vmatprep.subr.mxu0 0.0
    %1064 = vmatpush1.msra.mxu0 0.0
    %1065 = vmatprep.subr.mxu0 0.0
    %1066 = vmatpush1.msra.mxu0 0.0
    %1067 = vmatprep.subr.mxu0 0.0
    %1068 = vmatpush1.msra.mxu0 0.0
    %1069 = vmatprep.subr.mxu0 0.0
    %1070 = vmatpush1.msra.mxu0 0.0
    %1071 = vmatprep.subr.mxu0 0.0
    %1072 = vmatpush1.msra.mxu0 0.0
    %1073 = vmatprep.subr.mxu0 0.0
    %1074 = vmatpush1.msra.mxu0 0.0
    %1075 = vmatprep.subr.mxu0 0.0
    %1076 = vmatpush1.msra.mxu0 0.0
    %1077 = vmatprep.subr.mxu0 0.0
    %1078 = vmatpush1.msra.mxu0 0.0
    %1079 = vmatprep.subr.mxu0 0.0
    %1080 = vmatpush1.msra.mxu0 0.0
    %1081 = vmatprep.subr.mxu0 0.0
    %1082 = vmatpush1.msra.mxu0 0.0
    %1083 = vmatprep.subr.mxu0 0.0
    %1084 = vmatpush1.msra.mxu0 0.0
    %1085 = vmatprep.subr.mxu0 0.0
    %1086 = vmatpush1.msra.mxu0 0.0
    %1087 = vmatprep.subr.mxu0 0.0
    %1088 = vmatpush1.msra.mxu0 0.0
    %1089 = vmatprep.subr.mxu0 0.0
    %1090 = vmatpush1.msra.mxu0 0.0
    %1091 = vmatprep.subr.mxu0 0.0
    %1092 = vmatpush1.msra.mxu0 0.0
    %1093 = vmatprep.subr.mxu0 0.0
    %1094 = vmatpush1.msra.mxu0 0.0
    %1095 = vmatprep.subr.mxu0 0.0
    %1096 = vmatpush1.msra.mxu0 0.0
    %1097 = vmatprep.subr.mxu0 0.0
    %1098 = vmatpush1.msra.mxu0 0.0
    %1099 = vmatprep.subr.mxu0 0.0
    %1100 = vmatpush1.msra.mxu0 0.0
    %1101 = vmatprep.subr.mxu0 0.0
    %1102 = vmatpush1.msra.mxu0 0.0
    %1103 = vmatprep.subr.mxu0 0.0
    %1104 = vmatpush1.msra.mxu0 0.0
    %1105 = vmatprep.subr.mxu0 0.0
    %1106 = vmatpush1.msra.mxu0 0.0
    %1107 = vmatprep.subr.mxu0 0.0
    %1108 = vmatpush1.msra.mxu0 0.0
    %1109 = vmatprep.mubr.f32.mxu0 0.0
    %1110 = vmatmul.mubr.f32.gmra.mrb[0].mxu0 %v1040
    %v1111 = vpop.f32.mrb[0].mxu0
    %v1112 = vadd.f32 %v1037, %v1111
    %v1113 = vpop.f32.mrb[0].mxu0
    %1114 = vmatprep.mubr.f32.mxu0 0.0
    %1115 = vmatmul.mubr.f32.gmra.mrb[0].mxu0 %v1043
    %v1116 = vpop.f32.mrb[0].mxu0
    %v1117 = vadd.f32 %v1037, %v1116
    %v1118 = vpop.f32.mrb[0].mxu0
    %1119 = vdwg.mxu0
    %vm1120 = vcmask 64512
    %1121 = vst.msk [vmem:[%s14] sm:$0xff] %vm1120, %v1112
    %1122 = vst.msk [vmem:[%s14 + $0x8] sm:$0xff] %vm1120, %v1117
    %v1123 = vadd.f32 %v723, %v862
    %v1124 = vadd.f32 %v1123, %v604
    %vm1125 = vcmask 0
    %1126 = vst.msk [vmem:[#allocation20] sm:$0x1] %vm1125, %v1124
    // Predicated region
    $region70: #{gcn_forward.1} parent=1 // pred_check
      _
    $region71: #{gcn_forward.1} parent=1 // pred_check_branch
      %1128 = sbr.rel (0) target = $region73
    $region72: #{gcn_forward.1} parent=1 // pred_region
      %s1130 = ssub.s32 256, 256
      %1131 = vsyncadd [#allocation4], %s1130
      %s1132 = sshll.u32 [#allocation13], 4
      %s1133 = int_to_ptr.vmem [resolvable:$true] %s1132
      %1138 = dma.vmem_to_hbm [thread:$0]  %s1133, 256, %s11, [#allocation4], 128, 128, 8
    $region73: #{gcn_forward.1} parent=1 // pred_fallthru
      _
    // Predicated region
    $region74: #{gcn_forward.1} parent=1 // pred_check
      _
    $region75: #{gcn_forward.1} parent=1 // pred_check_branch
      %1140 = sbr.rel (0) target = $region77
    $region76: #{gcn_forward.1} parent=1 // pred_region
      %s1142 = ssub.s32 256, 256
      %1143 = vsyncadd [#allocation15], %s1142
      %s1144 = sshll.u32 [#allocation14], 4
      %s1145 = int_to_ptr.vmem [resolvable:$true] %s1144
      %1150 = dma.vmem_to_hbm [thread:$0]  %s1145, 256, %s12, [#allocation15], 128, 128, 8
    $region77: #{gcn_forward.1} parent=1 // pred_fallthru
      _
    // Predicated region
    $region78: #{gcn_forward.1} parent=1 // pred_check
      _
    $region79: #{gcn_forward.1} parent=1 // pred_check_branch
      %1152 = sbr.rel (0) target = $region81
    $region80: #{gcn_forward.1} parent=1 // pred_region
      %s1154 = ssub.s32 256, 256
      %1155 = vsyncadd [#allocation15], %s1154
      %s1156 = sshll.u32 [#allocation16], 4
      %s1157 = int_to_ptr.vmem [resolvable:$true] %s1156
      %1162 = dma.vmem_to_hbm [thread:$0]  %s1157, 256, %s13, [#allocation15], 128, 128, 8
    $region81: #{gcn_forward.1} parent=1 // pred_fallthru
      _
    // Predicated region
    $region82: #{gcn_forward.1} parent=1 // pred_check
      _
    $region83: #{gcn_forward.1} parent=1 // pred_check_branch
      %1164 = sbr.rel (0) target = $region85
    $region84: #{gcn_forward.1} parent=1 // pred_region
      _
    $region85: #{gcn_forward.1} parent=1 // pred_fallthru
      _
    // Predicated region
    $region86: #{gcn_forward.1} parent=1 // pred_check
      _
    $region87: #{gcn_forward.1} parent=1 // pred_check_branch
      %1166 = sbr.rel (0) target = $region89
    $region88: #{gcn_forward.1} parent=1 // pred_region
      %s1168 = ssub.s32 256, 256
      %1169 = vsyncadd [#allocation18], %s1168
      %s1170 = sshll.u32 [#allocation17], 4
      %s1171 = int_to_ptr.vmem [resolvable:$true] %s1170
      %1176 = dma.vmem_to_hbm [thread:$0]  %s1171, 256, %s15, [#allocation18], 128, 128, 8
    $region89: #{gcn_forward.1} parent=1 // pred_fallthru
      _
    // Predicated region
    $region90: #{gcn_forward.1} parent=1 // pred_check
      _
    $region91: #{gcn_forward.1} parent=1 // pred_check_branch
      %1178 = sbr.rel (0) target = $region93
    $region92: #{gcn_forward.1} parent=1 // pred_region
      %s1180 = ssub.s32 256, 256
      %1181 = vsyncadd [#allocation18], %s1180
      %s1182 = sshll.u32 [#allocation19], 4
      %s1183 = int_to_ptr.vmem [resolvable:$true] %s1182
      %1188 = dma.vmem_to_hbm [thread:$0]  %s1183, 256, %s16, [#allocation18], 128, 128, 8
    $region93: #{gcn_forward.1} parent=1 // pred_fallthru
      _
    // Predicated region
    $region94: #{gcn_forward.1} parent=1 // pred_check
      _
    $region95: #{gcn_forward.1} parent=1 // pred_check_branch
      %1190 = sbr.rel (0) target = $region97
    $region96: #{gcn_forward.1} parent=1 // pred_region
      %s1192 = ssub.s32 16, 16
      %1193 = vsyncadd [#allocation21], %s1192
      %s1195 = sshll.u32 [#allocation20], 4
      %s1196 = int_to_ptr.vmem [resolvable:$true] %s1195
      %1198 = dma.vmem_to_hbm [thread:$0]  %s1196, 16, %s17, [#allocation21]
    $region97: #{gcn_forward.1} parent=1 // pred_fallthru
      _
    // Predicated region
    $region98: #{gcn_forward.1} parent=1 // pred_check
      _
    $region99: #{gcn_forward.1} parent=1 // pred_check_branch
      %1200 = sbr.rel (0) target = $region101
    $region100: #{gcn_forward.1} parent=1 // pred_region
      %1201 = dma.done [#allocation4], 256
    $region101: #{gcn_forward.1} parent=1 // pred_fallthru
      _
    // Predicated region
    $region102: #{gcn_forward.1} parent=1 // pred_check
      _
    $region103: #{gcn_forward.1} parent=1 // pred_check_branch
      %1203 = sbr.rel (0) target = $region105
    $region104: #{gcn_forward.1} parent=1 // pred_region
      %1204 = dma.done [#allocation15], 256
    $region105: #{gcn_forward.1} parent=1 // pred_fallthru
      _
    // Predicated region
    $region106: #{gcn_forward.1} parent=1 // pred_check
      _
    $region107: #{gcn_forward.1} parent=1 // pred_check_branch
      %1206 = sbr.rel (0) target = $region109
    $region108: #{gcn_forward.1} parent=1 // pred_region
      %1207 = dma.done [#allocation15], 256
    $region109: #{gcn_forward.1} parent=1 // pred_fallthru
      _
    // Predicated region
    $region110: #{gcn_forward.1} parent=1 // pred_check
      _
    $region111: #{gcn_forward.1} parent=1 // pred_check_branch
      %1209 = sbr.rel (0) target = $region113
    $region112: #{gcn_forward.1} parent=1 // pred_region
      _
    $region113: #{gcn_forward.1} parent=1 // pred_fallthru
      _
    // Predicated region
    $region114: #{gcn_forward.1} parent=1 // pred_check
      _
    $region115: #{gcn_forward.1} parent=1 // pred_check_branch
      %1211 = sbr.rel (0) target = $region117
    $region116: #{gcn_forward.1} parent=1 // pred_region
      %1212 = dma.done [#allocation18], 256
    $region117: #{gcn_forward.1} parent=1 // pred_fallthru
      _
    // Predicated region
    $region118: #{gcn_forward.1} parent=1 // pred_check
      _
    $region119: #{gcn_forward.1} parent=1 // pred_check_branch
      %1214 = sbr.rel (0) target = $region121
    $region120: #{gcn_forward.1} parent=1 // pred_region
      %1215 = dma.done [#allocation18], 256
    $region121: #{gcn_forward.1} parent=1 // pred_fallthru
      _
    // Predicated region
    $region122: #{gcn_forward.1} parent=1 // pred_check
      _
    $region123: #{gcn_forward.1} parent=1 // pred_check_branch
      %1217 = sbr.rel (0) target = $region125
    $region124: #{gcn_forward.1} parent=1 // pred_region
      %1218 = dma.done [#allocation21], 16
    $region125: #{gcn_forward.1} parent=1 // pred_fallthru
      _
    %1219 = vsyncpa [#allocation3], 1
    %1220 = vsyncpa [#allocation6], 1
    %1221 = vsyncpa [#allocation9], 1
    %1222 = vsyncpa [#allocation12], 1
    %1223 = vsyncpa [#allocation4], 1
    %1224 = vsyncpa [#allocation15], 1
    %1225 = vsyncpa [#allocation18], 1
    %1226 = vsyncpa [#allocation21], 1

</llo_original>
